<compile_context>
chip_gen: v5e
topology: v5e:2x2
jax: 0.10.0
libtpu: 0.0.40
codegen_flags: <defaults>
</compile_context>

<pallas_src>
import jax
import jax.numpy as jnp
from jax import lax
from jax.experimental import pallas as pl
from jax.experimental.pallas import tpu as pltpu


def _san_kernel(x_ref, w1_ref, b1_ref, w2_ref, b2_ref,
                fw1_ref, fb1_ref, fw2_ref, fb2_ref, out_ref):
    # x tile arrives batch-major (TB, Cin); contract its Cin axis against w1t's Cin
    # axis so the result is feature-major (128, TB): batch on lanes, lane-dense stores.
    y1 = lax.dot_general(w1_ref[...], x_ref[...],
                         dimension_numbers=(((1,), (1,)), ((), ())),
                         preferred_element_type=jnp.float32)              # (128, TB)
    y1 = jnp.maximum(y1 + b1_ref[...], 0.0).astype(jnp.bfloat16)

    y2 = jnp.dot(w2_ref[...], y1, preferred_element_type=jnp.float32)     # (64, TB)
    y2 = jnp.maximum(y2 + b2_ref[...], 0.0).astype(jnp.bfloat16)

    # fc1 (64 -> 512) + fc2 (512 -> 1), chunked over the 512 hidden units so the live
    # intermediate is 128 x TB instead of 512 x TB.
    tb = out_ref.shape[1]
    n_chunks = fw1_ref.shape[0] // 128                                    # 512 / 128 = 4

    def chunk(c, acc):
        r = pl.multiple_of(c * 128, 128)
        hc = jnp.dot(fw1_ref[pl.ds(r, 128), :], y2,
                     preferred_element_type=jnp.float32)                  # (128, TB)
        hc = jnp.maximum(hc + fb1_ref[pl.ds(r, 128), :], 0.0).astype(jnp.bfloat16)
        # fw2 chunk is a (128, 1) column; contract its sublane axis with hc's.
        return acc + lax.dot_general(fw2_ref[pl.ds(r, 128), :], hc,
                                     dimension_numbers=(((0,), (0,)), ((), ())),
                                     preferred_element_type=jnp.float32)  # (1, TB)

    acc = lax.fori_loop(0, n_chunks, chunk,
                        jnp.zeros((1, tb), jnp.float32), unroll=True)
    out_ref[...] = acc + fb2_ref[...]                                      # (1, TB), lane-dense


def prepare_params(p):
    """One-time repack into the kernel layout.  Only the center conv tap is kept: with
    L == 1 and padding == 1 the k=0/k=2 taps only ever touch zero padding, so dropping
    them is exact.  Weights go to bf16 (f32 accumulation in-kernel); biases stay f32.
    NOTE: init_params stores conv weights as (k, Cin, Cout); a real PyTorch
    Conv1d.weight is (Cout, Cin, k) whose center tap weight[:, :, 1] is already
    (out, in) -- adapt the repack accordingly when porting real checkpoints."""
    return dict(
        w1t=p["w1"][1].T.astype(jnp.bfloat16),              # (128, Cin)
        b1c=p["b1"].reshape(-1, 1).astype(jnp.float32),     # (128, 1)
        w2t=p["w2"][1].T.astype(jnp.bfloat16),              # (64, 128)
        b2c=p["b2"].reshape(-1, 1).astype(jnp.float32),     # (64, 1)
        fw1t=p["fw1"].T.astype(jnp.bfloat16),               # (512, 64)
        fb1c=p["fb1"].reshape(-1, 1).astype(jnp.float32),   # (512, 1)
        fw2c=p["fw2"].astype(jnp.bfloat16),                 # (512, 1)
        fb2c=p["fb2"].reshape(-1, 1).astype(jnp.float32),   # (1, 1)
    )


def solvent_accessibility_forward(x, prep):
    """x: (B, C_in, L) float32 — same layout as the PyTorch Conv1d input (L must be 1)."""
    B, Cin, L = x.shape
    assert L == 1 and prep["fw1t"].shape[1] == 64 * L, "fc1=Linear(64,512) requires L == 1"

    # Batch tile: large (amortizes the ~0.35us per-grid-step overhead), multiple of 256,
    # capped so the grid keeps >= 2 steps when B allows (work for both v7x TCs).
    TB_MAX = 2048                                   # ~3 MiB/step; 4096 also fits if desired
    half = -(-B // 2)                               # ceil(B / 2)
    TB = min(TB_MAX, max(256, -(-half // 256) * 256))
    Bp = -(-B // TB) * TB

    # Batch-major x, bf16, no transpose; padded rows yield finite garbage, sliced off below.
    x2 = x.reshape(B, Cin * L).astype(jnp.bfloat16)
    if Bp != B:
        x2 = jnp.pad(x2, ((0, Bp - B), (0, 0)))

    inputs = (x2, prep["w1t"], prep["b1c"], prep["w2t"], prep["b2c"],
              prep["fw1t"], prep["fb1c"], prep["fw2c"], prep["fb2c"])

    # Weights/biases pinned: constant block index across the B grid axis (DMA'd once).
    weight_specs = [pl.BlockSpec(a.shape, lambda i: (0, 0)) for a in inputs[1:]]

    flops = 2 * Bp * (Cin * 128 + 128 * 64 + 64 * 512 + 512 * 1)
    bytes_accessed = (2 * Bp * Cin + 4 * Bp                              # x (bf16) + out (f32)
                      + 2 * (128 * Cin + 64 * 128 + 512 * 64 + 512)      # bf16 weights
                      + 4 * (128 + 64 + 512 + 1))                        # f32 biases

    out = pl.pallas_call(
        _san_kernel,
        out_shape=jax.ShapeDtypeStruct((1, Bp), jnp.float32),
        grid=(Bp // TB,),
        in_specs=[pl.BlockSpec((TB, Cin), lambda i: (i, 0))] + weight_specs,
        out_specs=pl.BlockSpec((1, TB), lambda i: (0, i)),
        compiler_params=pltpu.CompilerParams(
            dimension_semantics=("parallel",)),          # shards B across v7x's 2 TCs
        cost_estimate=pl.CostEstimate(flops=flops, transcendentals=0,
                                      bytes_accessed=bytes_accessed),
    )(*inputs)

    return out[:, :B].T                                  # (B, 1), matches PyTorch output


def init_params(key, in_channels, L=1):
    ks = jax.random.split(key, 8)
    s = 0.1
    return dict(
        w1=jax.random.normal(ks[0], (3, in_channels, 128), jnp.float32) * s,
        b1=jax.random.normal(ks[1], (1, 128), jnp.float32) * s,
        w2=jax.random.normal(ks[2], (3, 128, 64), jnp.float32) * s,
        b2=jax.random.normal(ks[3], (1, 64), jnp.float32) * s,
        fw1=jax.random.normal(ks[4], (64 * L, 512), jnp.float32) * s,
        fb1=jax.random.normal(ks[5], (1, 512), jnp.float32) * s,
        fw2=jax.random.normal(ks[6], (512, 1), jnp.float32) * s,
        fb2=jax.random.normal(ks[7], (1, 1), jnp.float32) * s,
    )


def ref_forward(x, p):
    """Pure-JAX f32 reference mirroring the PyTorch NCL semantics (full 3-tap convs)."""
    B, Cin, L = x.shape
    xp = jnp.pad(x, ((0, 0), (0, 0), (1, 1)))
    y1 = sum(jnp.einsum("bcl,co->bol", xp[:, :, k:k + L], p["w1"][k])
             for k in range(3)) + p["b1"][0][None, :, None]
    y1 = jnp.maximum(y1, 0.0)
    y1p = jnp.pad(y1, ((0, 0), (0, 0), (1, 1)))
    y2 = sum(jnp.einsum("bcl,co->bol", y1p[:, :, k:k + L], p["w2"][k])
             for k in range(3)) + p["b2"][0][None, :, None]
    y2 = jnp.maximum(y2, 0.0)
    y2f = y2.reshape(B, -1)                               # (B, 64*L), L == 1
    h = jnp.maximum(y2f @ p["fw1"] + p["fb1"], 0.0)
    return h @ p["fw2"] + p["fb2"]


if __name__ == "__main__":
    key = jax.random.PRNGKey(0)
    kx, kp = jax.random.split(key)

    # fc1 = Linear(64, 512) after flattening (B, 64, L) forces L == 1.
    B, Cin, L = 2, 4, 1
    x = jax.random.normal(kx, (B, Cin, L), jnp.float32)
    params = init_params(kp, Cin, L)
    prep = prepare_params(params)

    out = solvent_accessibility_forward(x, prep)
    jax.block_until_ready(out)

    ref = ref_forward(x, params)
    assert out.shape == (B, 1)
    # bf16 weights / bf16 activation casts -> loosened tolerance vs the f32 reference.
    assert jnp.allclose(out, ref, atol=3e-2, rtol=3e-2), (out, ref)

    print("KERNEL_OK")
</pallas_src>

<mosaic_0001>
module attributes {stable_mosaic.version = 11 : i64} {
  func.func @_san_kernel(%arg0: i32, %arg1: memref<256x4xbf16, #tpu.memory_space<vmem>>, %arg2: memref<128x4xbf16, #tpu.memory_space<vmem>>, %arg3: memref<128x1xf32, #tpu.memory_space<vmem>>, %arg4: memref<64x128xbf16, #tpu.memory_space<vmem>>, %arg5: memref<64x1xf32, #tpu.memory_space<vmem>>, %arg6: memref<512x64xbf16, #tpu.memory_space<vmem>>, %arg7: memref<512x1xf32, #tpu.memory_space<vmem>>, %arg8: memref<512x1xbf16, #tpu.memory_space<vmem>>, %arg9: memref<1x1xf32, #tpu.memory_space<vmem>>, %arg10: memref<1x256xf32, #tpu.memory_space<vmem>>) attributes {dimension_semantics = [#tpu.dimension_semantics<parallel>], iteration_bounds = array<i64: 1>, scalar_prefetch = 0 : i64, scratch_operands = 0 : i64, tpu.core_type = #tpu.core_type<tc>, window_params = [{transform_indices = @transform_0, window_bounds = array<i64: 256, 4>}, {pipeline_mode = #tpu.pipeline_mode<synchronous>, transform_indices = @transform_1, window_bounds = array<i64: 128, 4>}, {pipeline_mode = #tpu.pipeline_mode<synchronous>, transform_indices = @transform_2, window_bounds = array<i64: 128, 1>}, {pipeline_mode = #tpu.pipeline_mode<synchronous>, transform_indices = @transform_3, window_bounds = array<i64: 64, 128>}, {pipeline_mode = #tpu.pipeline_mode<synchronous>, transform_indices = @transform_4, window_bounds = array<i64: 64, 1>}, {pipeline_mode = #tpu.pipeline_mode<synchronous>, transform_indices = @transform_5, window_bounds = array<i64: 512, 64>}, {pipeline_mode = #tpu.pipeline_mode<synchronous>, transform_indices = @transform_6, window_bounds = array<i64: 512, 1>}, {pipeline_mode = #tpu.pipeline_mode<synchronous>, transform_indices = @transform_7, window_bounds = array<i64: 512, 1>}, {pipeline_mode = #tpu.pipeline_mode<synchronous>, transform_indices = @transform_8, window_bounds = array<i64: 1, 1>}, {transform_indices = @transform_9, window_bounds = array<i64: 1, 256>}]} {
    %c0 = arith.constant 0 : index
    %c0_0 = arith.constant 0 : index
    %0 = vector.load %arg2[%c0, %c0_0] : memref<128x4xbf16, #tpu.memory_space<vmem>>, vector<128x4xbf16>
    %c0_1 = arith.constant 0 : index
    %c0_2 = arith.constant 0 : index
    %1 = vector.load %arg1[%c0_1, %c0_2] : memref<256x4xbf16, #tpu.memory_space<vmem>>, vector<256x4xbf16>
    %cst = arith.constant dense<0.000000e+00> : vector<128x256xf32>
    %2 = tpu.matmul %0, %1, %cst {dimension_numbers = #tpu.dot_dimension_numbers<[1], [1], [0], [0], [0, 0, 1, 0], [], []>} : vector<128x4xbf16>, vector<256x4xbf16>, vector<128x256xf32> -> vector<128x256xf32>
    %c0_3 = arith.constant 0 : index
    %c0_4 = arith.constant 0 : index
    %3 = vector.load %arg3[%c0_3, %c0_4] : memref<128x1xf32, #tpu.memory_space<vmem>>, vector<128x1xf32>
    %4 = vector.broadcast %3 : vector<128x1xf32> to vector<128x256xf32>
    %5 = arith.addf %2, %4 : vector<128x256xf32>
    %cst_5 = arith.constant 0.000000e+00 : f32
    %6 = vector.broadcast %cst_5 : f32 to vector<128x256xf32>
    %7 = arith.maximumf %5, %6 : vector<128x256xf32>
    %8 = arith.truncf %7 : vector<128x256xf32> to vector<128x256xbf16>
    %c0_6 = arith.constant 0 : index
    %c0_7 = arith.constant 0 : index
    %9 = vector.load %arg4[%c0_6, %c0_7] : memref<64x128xbf16, #tpu.memory_space<vmem>>, vector<64x128xbf16>
    %cst_8 = arith.constant dense<0.000000e+00> : vector<64x256xf32>
    %10 = tpu.matmul %9, %8, %cst_8 {dimension_numbers = #tpu.dot_dimension_numbers<[1], [0], [0], [1], [0, 0, 1, 1], [], []>} : vector<64x128xbf16>, vector<128x256xbf16>, vector<64x256xf32> -> vector<64x256xf32>
    %c0_9 = arith.constant 0 : index
    %c0_10 = arith.constant 0 : index
    %11 = vector.load %arg5[%c0_9, %c0_10] : memref<64x1xf32, #tpu.memory_space<vmem>>, vector<64x1xf32>
    %12 = vector.broadcast %11 : vector<64x1xf32> to vector<64x256xf32>
    %13 = arith.addf %10, %12 : vector<64x256xf32>
    %cst_11 = arith.constant 0.000000e+00 : f32
    %14 = vector.broadcast %cst_11 : f32 to vector<64x256xf32>
    %15 = arith.maximumf %13, %14 : vector<64x256xf32>
    %16 = arith.truncf %15 : vector<64x256xf32> to vector<64x256xbf16>
    %cst_12 = arith.constant 0.000000e+00 : f32
    %17 = vector.broadcast %cst_12 : f32 to vector<1x256xf32>
    %c0_i32 = arith.constant 0 : i32
    %c128_i32 = arith.constant 128 : i32
    %18 = arith.muli %c0_i32, %c128_i32 : i32
    %19 = tpu.assume_multiple %18, 128 : i32
    %20 = arith.index_cast %19 : i32 to index
    %c0_13 = arith.constant 0 : index
    %21 = vector.load %arg6[%20, %c0_13] : memref<512x64xbf16, #tpu.memory_space<vmem>>, vector<128x64xbf16>
    %cst_14 = arith.constant dense<0.000000e+00> : vector<128x256xf32>
    %22 = tpu.matmul %21, %16, %cst_14 {dimension_numbers = #tpu.dot_dimension_numbers<[1], [0], [0], [1], [0, 0, 1, 1], [], []>} : vector<128x64xbf16>, vector<64x256xbf16>, vector<128x256xf32> -> vector<128x256xf32>
    %23 = arith.index_cast %19 : i32 to index
    %c0_15 = arith.constant 0 : index
    %24 = vector.load %arg7[%23, %c0_15] : memref<512x1xf32, #tpu.memory_space<vmem>>, vector<128x1xf32>
    %25 = vector.broadcast %24 : vector<128x1xf32> to vector<128x256xf32>
    %26 = arith.addf %22, %25 : vector<128x256xf32>
    %cst_16 = arith.constant 0.000000e+00 : f32
    %27 = vector.broadcast %cst_16 : f32 to vector<128x256xf32>
    %28 = arith.maximumf %26, %27 : vector<128x256xf32>
    %29 = arith.truncf %28 : vector<128x256xf32> to vector<128x256xbf16>
    %30 = arith.index_cast %19 : i32 to index
    %c0_17 = arith.constant 0 : index
    %31 = vector.load %arg8[%30, %c0_17] : memref<512x1xbf16, #tpu.memory_space<vmem>>, vector<128x1xbf16>
    %cst_18 = arith.constant dense<0.000000e+00> : vector<1x256xf32>
    %32 = tpu.matmul %31, %29, %cst_18 {dimension_numbers = #tpu.dot_dimension_numbers<[0], [0], [1], [1], [0, 1, 1, 1], [], []>} : vector<128x1xbf16>, vector<128x256xbf16>, vector<1x256xf32> -> vector<1x256xf32>
    %33 = arith.addf %17, %32 : vector<1x256xf32>
    %c1_i32 = arith.constant 1 : i32
    %c128_i32_19 = arith.constant 128 : i32
    %34 = arith.muli %c1_i32, %c128_i32_19 : i32
    %35 = tpu.assume_multiple %34, 128 : i32
    %36 = arith.index_cast %35 : i32 to index
    %c0_20 = arith.constant 0 : index
    %37 = vector.load %arg6[%36, %c0_20] : memref<512x64xbf16, #tpu.memory_space<vmem>>, vector<128x64xbf16>
    %cst_21 = arith.constant dense<0.000000e+00> : vector<128x256xf32>
    %38 = tpu.matmul %37, %16, %cst_21 {dimension_numbers = #tpu.dot_dimension_numbers<[1], [0], [0], [1], [0, 0, 1, 1], [], []>} : vector<128x64xbf16>, vector<64x256xbf16>, vector<128x256xf32> -> vector<128x256xf32>
    %39 = arith.index_cast %35 : i32 to index
    %c0_22 = arith.constant 0 : index
    %40 = vector.load %arg7[%39, %c0_22] : memref<512x1xf32, #tpu.memory_space<vmem>>, vector<128x1xf32>
    %41 = vector.broadcast %40 : vector<128x1xf32> to vector<128x256xf32>
    %42 = arith.addf %38, %41 : vector<128x256xf32>
    %cst_23 = arith.constant 0.000000e+00 : f32
    %43 = vector.broadcast %cst_23 : f32 to vector<128x256xf32>
    %44 = arith.maximumf %42, %43 : vector<128x256xf32>
    %45 = arith.truncf %44 : vector<128x256xf32> to vector<128x256xbf16>
    %46 = arith.index_cast %35 : i32 to index
    %c0_24 = arith.constant 0 : index
    %47 = vector.load %arg8[%46, %c0_24] : memref<512x1xbf16, #tpu.memory_space<vmem>>, vector<128x1xbf16>
    %cst_25 = arith.constant dense<0.000000e+00> : vector<1x256xf32>
    %48 = tpu.matmul %47, %45, %cst_25 {dimension_numbers = #tpu.dot_dimension_numbers<[0], [0], [1], [1], [0, 1, 1, 1], [], []>} : vector<128x1xbf16>, vector<128x256xbf16>, vector<1x256xf32> -> vector<1x256xf32>
    %49 = arith.addf %33, %48 : vector<1x256xf32>
    %c2_i32 = arith.constant 2 : i32
    %c128_i32_26 = arith.constant 128 : i32
    %50 = arith.muli %c2_i32, %c128_i32_26 : i32
    %51 = tpu.assume_multiple %50, 128 : i32
    %52 = arith.index_cast %51 : i32 to index
    %c0_27 = arith.constant 0 : index
    %53 = vector.load %arg6[%52, %c0_27] : memref<512x64xbf16, #tpu.memory_space<vmem>>, vector<128x64xbf16>
    %cst_28 = arith.constant dense<0.000000e+00> : vector<128x256xf32>
    %54 = tpu.matmul %53, %16, %cst_28 {dimension_numbers = #tpu.dot_dimension_numbers<[1], [0], [0], [1], [0, 0, 1, 1], [], []>} : vector<128x64xbf16>, vector<64x256xbf16>, vector<128x256xf32> -> vector<128x256xf32>
    %55 = arith.index_cast %51 : i32 to index
    %c0_29 = arith.constant 0 : index
    %56 = vector.load %arg7[%55, %c0_29] : memref<512x1xf32, #tpu.memory_space<vmem>>, vector<128x1xf32>
    %57 = vector.broadcast %56 : vector<128x1xf32> to vector<128x256xf32>
    %58 = arith.addf %54, %57 : vector<128x256xf32>
    %cst_30 = arith.constant 0.000000e+00 : f32
    %59 = vector.broadcast %cst_30 : f32 to vector<128x256xf32>
    %60 = arith.maximumf %58, %59 : vector<128x256xf32>
    %61 = arith.truncf %60 : vector<128x256xf32> to vector<128x256xbf16>
    %62 = arith.index_cast %51 : i32 to index
    %c0_31 = arith.constant 0 : index
    %63 = vector.load %arg8[%62, %c0_31] : memref<512x1xbf16, #tpu.memory_space<vmem>>, vector<128x1xbf16>
    %cst_32 = arith.constant dense<0.000000e+00> : vector<1x256xf32>
    %64 = tpu.matmul %63, %61, %cst_32 {dimension_numbers = #tpu.dot_dimension_numbers<[0], [0], [1], [1], [0, 1, 1, 1], [], []>} : vector<128x1xbf16>, vector<128x256xbf16>, vector<1x256xf32> -> vector<1x256xf32>
    %65 = arith.addf %49, %64 : vector<1x256xf32>
    %c3_i32 = arith.constant 3 : i32
    %c128_i32_33 = arith.constant 128 : i32
    %66 = arith.muli %c3_i32, %c128_i32_33 : i32
    %67 = tpu.assume_multiple %66, 128 : i32
    %68 = arith.index_cast %67 : i32 to index
    %c0_34 = arith.constant 0 : index
    %69 = vector.load %arg6[%68, %c0_34] : memref<512x64xbf16, #tpu.memory_space<vmem>>, vector<128x64xbf16>
    %cst_35 = arith.constant dense<0.000000e+00> : vector<128x256xf32>
    %70 = tpu.matmul %69, %16, %cst_35 {dimension_numbers = #tpu.dot_dimension_numbers<[1], [0], [0], [1], [0, 0, 1, 1], [], []>} : vector<128x64xbf16>, vector<64x256xbf16>, vector<128x256xf32> -> vector<128x256xf32>
    %71 = arith.index_cast %67 : i32 to index
    %c0_36 = arith.constant 0 : index
    %72 = vector.load %arg7[%71, %c0_36] : memref<512x1xf32, #tpu.memory_space<vmem>>, vector<128x1xf32>
    %73 = vector.broadcast %72 : vector<128x1xf32> to vector<128x256xf32>
    %74 = arith.addf %70, %73 : vector<128x256xf32>
    %cst_37 = arith.constant 0.000000e+00 : f32
    %75 = vector.broadcast %cst_37 : f32 to vector<128x256xf32>
    %76 = arith.maximumf %74, %75 : vector<128x256xf32>
    %77 = arith.truncf %76 : vector<128x256xf32> to vector<128x256xbf16>
    %78 = arith.index_cast %67 : i32 to index
    %c0_38 = arith.constant 0 : index
    %79 = vector.load %arg8[%78, %c0_38] : memref<512x1xbf16, #tpu.memory_space<vmem>>, vector<128x1xbf16>
    %cst_39 = arith.constant dense<0.000000e+00> : vector<1x256xf32>
    %80 = tpu.matmul %79, %77, %cst_39 {dimension_numbers = #tpu.dot_dimension_numbers<[0], [0], [1], [1], [0, 1, 1, 1], [], []>} : vector<128x1xbf16>, vector<128x256xbf16>, vector<1x256xf32> -> vector<1x256xf32>
    %81 = arith.addf %65, %80 : vector<1x256xf32>
    %c4_i32 = arith.constant 4 : i32
    %c0_40 = arith.constant 0 : index
    %c0_41 = arith.constant 0 : index
    %82 = vector.load %arg9[%c0_40, %c0_41] : memref<1x1xf32, #tpu.memory_space<vmem>>, vector<1x1xf32>
    %83 = vector.broadcast %82 : vector<1x1xf32> to vector<1x256xf32>
    %84 = arith.addf %81, %83 : vector<1x256xf32>
    %c0_42 = arith.constant 0 : index
    %c0_43 = arith.constant 0 : index
    %85 = vector.load %arg10[%c0_42, %c0_43] : memref<1x256xf32, #tpu.memory_space<vmem>>, vector<1x256xf32>
    tpu.vector_store %arg10[%c0_42, %c0_43], %84 {strides = array<i32>} : memref<1x256xf32, #tpu.memory_space<vmem>>, vector<1x256xf32>,
    return
  }
  func.func @transform_0(%arg0: i32) -> (i32, i32) {
    %c0_i32 = arith.constant 0 : i32
    %c0_i32_0 = arith.constant 0 : i32
    return %arg0, %c0_i32 : i32, i32
  }
  func.func @transform_1(%arg0: i32) -> (i32, i32) {
    %c0_i32 = arith.constant 0 : i32
    %c0_i32_0 = arith.constant 0 : i32
    %c0_i32_1 = arith.constant 0 : i32
    return %c0_i32, %c0_i32_0 : i32, i32
  }
  func.func @transform_2(%arg0: i32) -> (i32, i32) {
    %c0_i32 = arith.constant 0 : i32
    %c0_i32_0 = arith.constant 0 : i32
    %c0_i32_1 = arith.constant 0 : i32
    return %c0_i32, %c0_i32_0 : i32, i32
  }
  func.func @transform_3(%arg0: i32) -> (i32, i32) {
    %c0_i32 = arith.constant 0 : i32
    %c0_i32_0 = arith.constant 0 : i32
    %c0_i32_1 = arith.constant 0 : i32
    return %c0_i32, %c0_i32_0 : i32, i32
  }
  func.func @transform_4(%arg0: i32) -> (i32, i32) {
    %c0_i32 = arith.constant 0 : i32
    %c0_i32_0 = arith.constant 0 : i32
    %c0_i32_1 = arith.constant 0 : i32
    return %c0_i32, %c0_i32_0 : i32, i32
  }
  func.func @transform_5(%arg0: i32) -> (i32, i32) {
    %c0_i32 = arith.constant 0 : i32
    %c0_i32_0 = arith.constant 0 : i32
    %c0_i32_1 = arith.constant 0 : i32
    return %c0_i32, %c0_i32_0 : i32, i32
  }
  func.func @transform_6(%arg0: i32) -> (i32, i32) {
    %c0_i32 = arith.constant 0 : i32
    %c0_i32_0 = arith.constant 0 : i32
    %c0_i32_1 = arith.constant 0 : i32
    return %c0_i32, %c0_i32_0 : i32, i32
  }
  func.func @transform_7(%arg0: i32) -> (i32, i32) {
    %c0_i32 = arith.constant 0 : i32
    %c0_i32_0 = arith.constant 0 : i32
    %c0_i32_1 = arith.constant 0 : i32
    return %c0_i32, %c0_i32_0 : i32, i32
  }
  func.func @transform_8(%arg0: i32) -> (i32, i32) {
    %c0_i32 = arith.constant 0 : i32
    %c0_i32_0 = arith.constant 0 : i32
    %c0_i32_1 = arith.constant 0 : i32
    return %c0_i32, %c0_i32_0 : i32, i32
  }
  func.func @transform_9(%arg0: i32) -> (i32, i32) {
    %c0_i32 = arith.constant 0 : i32
    %c0_i32_0 = arith.constant 0 : i32
    return %c0_i32, %arg0 : i32, i32
  }
}

</mosaic_0001>

<llo_original>
// kernel: tpu_custom_call.1
$region0: #{tpu_custom_call.1}
  #allocation0 [shape = 'u32[]', space=smem, size = 0x4, offset = 0x4, fixed_abs, tag = 'smem constant byte address 0x4 - core index']
  #allocation1 [shape = 'u32[72,128]{1,0:T(1,128)}', space=vmem, size = 0x9000, scoped, tag = 'internal scratch']
  #allocation2 [shape = 'f32[1,1]{1,0:T(1,128)S(1)}', space=vmem, size = 0x200, scoped, tag = 'scoped memory for tpu_custom_call.1']
  %s0 = inlined_call_operand.vmem [shape: bf16[256,4], index: 0, kind: input, shape index: {}]
  %s1 = inlined_call_operand.vmem [shape: bf16[128,4], index: 1, kind: input, shape index: {}]
  %s2 = inlined_call_operand.vmem [shape: f32[128,1], index: 2, kind: input, shape index: {}]
  %s3 = inlined_call_operand.vmem [shape: bf16[64,128], index: 3, kind: input, shape index: {}]
  %s4 = inlined_call_operand.vmem [shape: f32[64,1], index: 4, kind: input, shape index: {}]
  %s5 = inlined_call_operand.vmem [shape: bf16[512,64], index: 5, kind: input, shape index: {}]
  %s6 = inlined_call_operand.vmem [shape: f32[512,1], index: 6, kind: input, shape index: {}]
  %s7 = inlined_call_operand.vmem [shape: bf16[512,1], index: 7, kind: input, shape index: {}]
  %s8 = inlined_call_operand.<no memory space> [shape: f32[1,1], index: 8, kind: input, shape index: {}]
  %s9 = inlined_call_operand.hbm [shape: f32[1,256], index: 9, kind: output, shape index: {}]
  %s10 = sld [smem:[#allocation0]]
  $region46: #{tpu_custom_call.1} parent=0
    _
  %s12 = ssub.s32 1, %s10
  %s13 = scalar_select 0, %s12, %s10
  %v14 = vstv %s8
  %15 = vst [vmem:[#allocation2] sm:$0x1] %v14
  $region1: #{tpu_custom_call.1} parent=0
    #allocation3 [shape = 'u8[1024]{0}', space=vmem, size = 0x400, scoped, tag = 'output window, operand 0, single buffered']
    #allocation4 [shape = 's32[1]{0}', space=sflag, size = 0x4, scoped, tag = 'scoped memory for tpu_custom_call.1']
    %16 = vsyncpa [#allocation4], 0
    // Predicated region
    $region2: #{tpu_custom_call.1} parent=1 // pred_check
      _
    $region3: #{tpu_custom_call.1} parent=1 // pred_check_branch
      %18 = sbr.rel (0) target = $region5
    $region4: #{tpu_custom_call.1} parent=1 // pred_region
      _
    $region5: #{tpu_custom_call.1} parent=1 // pred_fallthru
      _
    // Predicated region
    $region6: #{tpu_custom_call.1} parent=1 // pred_check
      _
    $region7: #{tpu_custom_call.1} parent=1 // pred_check_branch
      %20 = sbr.rel (0) target = $region9
    $region8: #{tpu_custom_call.1} parent=1 // pred_region
      _
    $region9: #{tpu_custom_call.1} parent=1 // pred_fallthru
      _
    // Predicated region
    $region10: #{tpu_custom_call.1} parent=1 // pred_check
      _
    $region11: #{tpu_custom_call.1} parent=1 // pred_check_branch
      %22 = sbr.rel (0) target = $region13
    $region12: #{tpu_custom_call.1} parent=1 // pred_region
      _
    $region13: #{tpu_custom_call.1} parent=1 // pred_fallthru
      _
    // Predicated region
    $region14: #{tpu_custom_call.1} parent=1 // pred_check
      _
    $region15: #{tpu_custom_call.1} parent=1 // pred_check_branch
      %24 = sbr.rel (0) target = $region17
    $region16: #{tpu_custom_call.1} parent=1 // pred_region
      _
    $region17: #{tpu_custom_call.1} parent=1 // pred_fallthru
      _
    // Predicated region
    $region18: #{tpu_custom_call.1} parent=1 // pred_check
      _
    $region19: #{tpu_custom_call.1} parent=1 // pred_check_branch
      %26 = sbr.rel (0) target = $region21
    $region20: #{tpu_custom_call.1} parent=1 // pred_region
      _
    $region21: #{tpu_custom_call.1} parent=1 // pred_fallthru
      _
    // Predicated region
    $region22: #{tpu_custom_call.1} parent=1 // pred_check
      _
    $region23: #{tpu_custom_call.1} parent=1 // pred_check_branch
      %28 = sbr.rel (0) target = $region25
    $region24: #{tpu_custom_call.1} parent=1 // pred_region
      _
    $region25: #{tpu_custom_call.1} parent=1 // pred_fallthru
      _
    // Predicated region
    $region26: #{tpu_custom_call.1} parent=1 // pred_check
      _
    $region27: #{tpu_custom_call.1} parent=1 // pred_check_branch
      %30 = sbr.rel (0) target = $region29
    $region28: #{tpu_custom_call.1} parent=1 // pred_region
      _
    $region29: #{tpu_custom_call.1} parent=1 // pred_fallthru
      _
    // Predicated region
    $region30: #{tpu_custom_call.1} parent=1 // pred_check
      _
    $region31: #{tpu_custom_call.1} parent=1 // pred_check_branch
      %32 = sbr.rel (0) target = $region33
    $region32: #{tpu_custom_call.1} parent=1 // pred_region
      _
    $region33: #{tpu_custom_call.1} parent=1 // pred_fallthru
      _
    // Predicated region
    $region34: #{tpu_custom_call.1} parent=1 // pred_check
      _
    $region35: #{tpu_custom_call.1} parent=1 // pred_check_branch
      %34 = sbr.rel (0) target = $region37
    $region36: #{tpu_custom_call.1} parent=1 // pred_region
      _
    $region37: #{tpu_custom_call.1} parent=1 // pred_fallthru
      _
    %v36 = vld [vmem:[%s1] sm:$0xf]
    %v37 = vld [vmem:[%s1 + $0x4] sm:$0xf]
    %v38 = vld [vmem:[%s1 + $0x8] sm:$0xf]
    %v39 = vld [vmem:[%s1 + $0xc] sm:$0xf]
    %v40 = vld [vmem:[%s1 + $0x10] sm:$0xf]
    %v41 = vld [vmem:[%s1 + $0x14] sm:$0xf]
    %v42 = vld [vmem:[%s1 + $0x18] sm:$0xf]
    %v43 = vld [vmem:[%s1 + $0x1c] sm:$0xf]
    %v44 = vld [vmem:[%s1 + $0x20] sm:$0xf]
    %v45 = vld [vmem:[%s1 + $0x24] sm:$0xf]
    %v46 = vld [vmem:[%s1 + $0x28] sm:$0xf]
    %v47 = vld [vmem:[%s1 + $0x2c] sm:$0xf]
    %v48 = vld [vmem:[%s1 + $0x30] sm:$0xf]
    %v49 = vld [vmem:[%s1 + $0x34] sm:$0xf]
    %v50 = vld [vmem:[%s1 + $0x38] sm:$0xf]
    %v51 = vld [vmem:[%s1 + $0x3c] sm:$0xf]
    %v52 = vld [vmem:[%s0] sm:$0xf]
    %v53 = vld [vmem:[%s0 + $0x4] sm:$0xf]
    %v54 = vld [vmem:[%s0 + $0x8] sm:$0xf]
    %v55 = vld [vmem:[%s0 + $0xc] sm:$0xf]
    %v56 = vld [vmem:[%s0 + $0x10] sm:$0xf]
    %v57 = vld [vmem:[%s0 + $0x14] sm:$0xf]
    %v58 = vld [vmem:[%s0 + $0x18] sm:$0xf]
    %v59 = vld [vmem:[%s0 + $0x1c] sm:$0xf]
    %v60 = vld [vmem:[%s0 + $0x20] sm:$0xf]
    %v61 = vld [vmem:[%s0 + $0x24] sm:$0xf]
    %v62 = vld [vmem:[%s0 + $0x28] sm:$0xf]
    %v63 = vld [vmem:[%s0 + $0x2c] sm:$0xf]
    %v64 = vld [vmem:[%s0 + $0x30] sm:$0xf]
    %v65 = vld [vmem:[%s0 + $0x34] sm:$0xf]
    %v66 = vld [vmem:[%s0 + $0x38] sm:$0xf]
    %v67 = vld [vmem:[%s0 + $0x3c] sm:$0xf]
    %v68 = vld [vmem:[%s0 + $0x40] sm:$0xf]
    %v69 = vld [vmem:[%s0 + $0x44] sm:$0xf]
    %v70 = vld [vmem:[%s0 + $0x48] sm:$0xf]
    %v71 = vld [vmem:[%s0 + $0x4c] sm:$0xf]
    %v72 = vld [vmem:[%s0 + $0x50] sm:$0xf]
    %v73 = vld [vmem:[%s0 + $0x54] sm:$0xf]
    %v74 = vld [vmem:[%s0 + $0x58] sm:$0xf]
    %v75 = vld [vmem:[%s0 + $0x5c] sm:$0xf]
    %v76 = vld [vmem:[%s0 + $0x60] sm:$0xf]
    %v77 = vld [vmem:[%s0 + $0x64] sm:$0xf]
    %v78 = vld [vmem:[%s0 + $0x68] sm:$0xf]
    %v79 = vld [vmem:[%s0 + $0x6c] sm:$0xf]
    %v80 = vld [vmem:[%s0 + $0x70] sm:$0xf]
    %v81 = vld [vmem:[%s0 + $0x74] sm:$0xf]
    %v82 = vld [vmem:[%s0 + $0x78] sm:$0xf]
    %v83 = vld [vmem:[%s0 + $0x7c] sm:$0xf]
    %v84 = vld [vmem:[%s2] sm:$0xff]
    %v85 = vld [vmem:[%s2 + $0x8] sm:$0xff]
    %v86 = vld [vmem:[%s2 + $0x10] sm:$0xff]
    %v87 = vld [vmem:[%s2 + $0x18] sm:$0xff]
    %v88 = vld [vmem:[%s2 + $0x20] sm:$0xff]
    %v89 = vld [vmem:[%s2 + $0x28] sm:$0xff]
    %v90 = vld [vmem:[%s2 + $0x30] sm:$0xff]
    %v91 = vld [vmem:[%s2 + $0x38] sm:$0xff]
    %v92 = vld [vmem:[%s2 + $0x40] sm:$0xff]
    %v93 = vld [vmem:[%s2 + $0x48] sm:$0xff]
    %v94 = vld [vmem:[%s2 + $0x50] sm:$0xff]
    %v95 = vld [vmem:[%s2 + $0x58] sm:$0xff]
    %v96 = vld [vmem:[%s2 + $0x60] sm:$0xff]
    %v97 = vld [vmem:[%s2 + $0x68] sm:$0xff]
    %v98 = vld [vmem:[%s2 + $0x70] sm:$0xff]
    %v99 = vld [vmem:[%s2 + $0x78] sm:$0xff]
    %101 = vset.pattern.permute.xlu0 0
    %102 = vperm.xlu0 %101, %v84
    %v103 = vpop.permute.xlu0 %102
    %106 = vset.pattern.permute.xlu0 0
    %107 = vperm.xlu0 %106, %v85
    %v108 = vpop.permute.xlu0 %107
    %111 = vset.pattern.permute.xlu0 0
    %112 = vperm.xlu0 %111, %v86
    %v113 = vpop.permute.xlu0 %112
    %116 = vset.pattern.permute.xlu0 0
    %117 = vperm.xlu0 %116, %v87
    %v118 = vpop.permute.xlu0 %117
    %121 = vset.pattern.permute.xlu0 0
    %122 = vperm.xlu0 %121, %v88
    %v123 = vpop.permute.xlu0 %122
    %126 = vset.pattern.permute.xlu0 0
    %127 = vperm.xlu0 %126, %v89
    %v128 = vpop.permute.xlu0 %127
    %131 = vset.pattern.permute.xlu0 0
    %132 = vperm.xlu0 %131, %v90
    %v133 = vpop.permute.xlu0 %132
    %136 = vset.pattern.permute.xlu0 0
    %137 = vperm.xlu0 %136, %v91
    %v138 = vpop.permute.xlu0 %137
    %141 = vset.pattern.permute.xlu0 0
    %142 = vperm.xlu0 %141, %v92
    %v143 = vpop.permute.xlu0 %142
    %146 = vset.pattern.permute.xlu0 0
    %147 = vperm.xlu0 %146, %v93
    %v148 = vpop.permute.xlu0 %147
    %151 = vset.pattern.permute.xlu0 0
    %152 = vperm.xlu0 %151, %v94
    %v153 = vpop.permute.xlu0 %152
    %156 = vset.pattern.permute.xlu0 0
    %157 = vperm.xlu0 %156, %v95
    %v158 = vpop.permute.xlu0 %157
    %161 = vset.pattern.permute.xlu0 0
    %162 = vperm.xlu0 %161, %v96
    %v163 = vpop.permute.xlu0 %162
    %166 = vset.pattern.permute.xlu0 0
    %167 = vperm.xlu0 %166, %v97
    %v168 = vpop.permute.xlu0 %167
    %171 = vset.pattern.permute.xlu0 0
    %172 = vperm.xlu0 %171, %v98
    %v173 = vpop.permute.xlu0 %172
    %176 = vset.pattern.permute.xlu0 0
    %177 = vperm.xlu0 %176, %v99
    %v178 = vpop.permute.xlu0 %177
    %v196 = vunpack.c.l.b16 %v36
    %v197 = vunpack.c.l.b16 %v37
    %v198 = vunpack.c.l.b16 %v38
    %v199 = vunpack.c.l.b16 %v39
    %v200 = vunpack.c.l.b16 %v40
    %v201 = vunpack.c.l.b16 %v41
    %v202 = vunpack.c.l.b16 %v42
    %v203 = vunpack.c.l.b16 %v43
    %v204 = vunpack.c.l.b16 %v44
    %v205 = vunpack.c.l.b16 %v45
    %v206 = vunpack.c.l.b16 %v46
    %v207 = vunpack.c.l.b16 %v47
    %v208 = vunpack.c.l.b16 %v48
    %v209 = vunpack.c.l.b16 %v49
    %v210 = vunpack.c.l.b16 %v50
    %v211 = vunpack.c.l.b16 %v51
    %v212 = vpack.c.b16 %v197, %v196
    %v213 = vpack.c.b16 %v199, %v198
    %v214 = vpack.c.b16 %v201, %v200
    %v215 = vpack.c.b16 %v203, %v202
    %v216 = vpack.c.b16 %v205, %v204
    %v217 = vpack.c.b16 %v207, %v206
    %v218 = vpack.c.b16 %v209, %v208
    %v219 = vpack.c.b16 %v211, %v210
    %v252 = vunpack.c.l.b16 %v52
    %v253 = vunpack.c.l.b16 %v53
    %v254 = vunpack.c.l.b16 %v54
    %v255 = vunpack.c.l.b16 %v55
    %v256 = vunpack.c.l.b16 %v56
    %v257 = vunpack.c.l.b16 %v57
    %v258 = vunpack.c.l.b16 %v58
    %v259 = vunpack.c.l.b16 %v59
    %v260 = vunpack.c.l.b16 %v60
    %v261 = vunpack.c.l.b16 %v61
    %v262 = vunpack.c.l.b16 %v62
    %v263 = vunpack.c.l.b16 %v63
    %v264 = vunpack.c.l.b16 %v64
    %v265 = vunpack.c.l.b16 %v65
    %v266 = vunpack.c.l.b16 %v66
    %v267 = vunpack.c.l.b16 %v67
    %v268 = vunpack.c.l.b16 %v68
    %v269 = vunpack.c.l.b16 %v69
    %v270 = vunpack.c.l.b16 %v70
    %v271 = vunpack.c.l.b16 %v71
    %v272 = vunpack.c.l.b16 %v72
    %v273 = vunpack.c.l.b16 %v73
    %v274 = vunpack.c.l.b16 %v74
    %v275 = vunpack.c.l.b16 %v75
    %v276 = vunpack.c.l.b16 %v76
    %v277 = vunpack.c.l.b16 %v77
    %v278 = vunpack.c.l.b16 %v78
    %v279 = vunpack.c.l.b16 %v79
    %v280 = vunpack.c.l.b16 %v80
    %v281 = vunpack.c.l.b16 %v81
    %v282 = vunpack.c.l.b16 %v82
    %v283 = vunpack.c.l.b16 %v83
    %v284 = vpack.c.b16 %v253, %v252
    %v285 = vpack.c.b16 %v255, %v254
    %v286 = vpack.c.b16 %v257, %v256
    %v287 = vpack.c.b16 %v259, %v258
    %v288 = vpack.c.b16 %v261, %v260
    %v289 = vpack.c.b16 %v263, %v262
    %v290 = vpack.c.b16 %v265, %v264
    %v291 = vpack.c.b16 %v267, %v266
    %v292 = vpack.c.b16 %v269, %v268
    %v293 = vpack.c.b16 %v271, %v270
    %v294 = vpack.c.b16 %v273, %v272
    %v295 = vpack.c.b16 %v275, %v274
    %v296 = vpack.c.b16 %v277, %v276
    %v297 = vpack.c.b16 %v279, %v278
    %v298 = vpack.c.b16 %v281, %v280
    %v299 = vpack.c.b16 %v283, %v282
    %vm300 = vcmask 31744
    %v302 = vsel %vm300, %v212, 0
    %v305 = vsel %vm300, %v213, 0
    %v308 = vsel %vm300, %v214, 0
    %v311 = vsel %vm300, %v215, 0
    %v314 = vsel %vm300, %v216, 0
    %v317 = vsel %vm300, %v217, 0
    %v320 = vsel %vm300, %v218, 0
    %v323 = vsel %vm300, %v219, 0
    %v326 = vsel %vm300, %v284, 0
    %v329 = vsel %vm300, %v285, 0
    %v332 = vsel %vm300, %v286, 0
    %v335 = vsel %vm300, %v287, 0
    %v338 = vsel %vm300, %v288, 0
    %v341 = vsel %vm300, %v289, 0
    %v344 = vsel %vm300, %v290, 0
    %v347 = vsel %vm300, %v291, 0
    %v350 = vsel %vm300, %v292, 0
    %v353 = vsel %vm300, %v293, 0
    %v356 = vsel %vm300, %v294, 0
    %v359 = vsel %vm300, %v295, 0
    %v362 = vsel %vm300, %v296, 0
    %v365 = vsel %vm300, %v297, 0
    %v368 = vsel %vm300, %v298, 0
    %v371 = vsel %vm300, %v299, 0
    %373 = vmatpush.bf16.xpose.msra.mxu0 %v347
    %374 = vmatpush.bf16.xpose.msra.mxu0 %v344
    %375 = vmatpush.bf16.xpose.msra.mxu0 %v341
    %376 = vmatpush.bf16.xpose.msra.mxu0 %v338
    %377 = vmatpush.bf16.xpose.msra.mxu0 %v335
    %378 = vmatpush.bf16.xpose.msra.mxu0 %v332
    %379 = vmatpush.bf16.xpose.msra.mxu0 %v329
    %380 = vmatpush.bf16.xpose.msra.mxu0 %v326
    %381 = vmatmul.bf16.gmra.mxu0 %v302
    %v382 = vpop.f32.mrf.mxu0
    %v383 = vadd.f32 %v103, %v382
    %v384 = vpop.f32.mrf.mxu0
    %v385 = vadd.f32 %v108, %v384
    %386 = vmatmul.bf16.gmra.mxu0 %v305
    %v387 = vpop.f32.mrf.mxu0
    %v388 = vadd.f32 %v113, %v387
    %v389 = vpop.f32.mrf.mxu0
    %v390 = vadd.f32 %v118, %v389
    %391 = vmatmul.bf16.gmra.mxu0 %v308
    %v392 = vpop.f32.mrf.mxu0
    %v393 = vadd.f32 %v123, %v392
    %v394 = vpop.f32.mrf.mxu0
    %v395 = vadd.f32 %v128, %v394
    %396 = vmatmul.bf16.gmra.mxu0 %v311
    %v397 = vpop.f32.mrf.mxu0
    %v398 = vadd.f32 %v133, %v397
    %v399 = vpop.f32.mrf.mxu0
    %v400 = vadd.f32 %v138, %v399
    %401 = vmatmul.bf16.gmra.mxu0 %v314
    %v402 = vpop.f32.mrf.mxu0
    %v403 = vadd.f32 %v143, %v402
    %v404 = vpop.f32.mrf.mxu0
    %v405 = vadd.f32 %v148, %v404
    %406 = vmatmul.bf16.gmra.mxu0 %v317
    %v407 = vpop.f32.mrf.mxu0
    %v408 = vadd.f32 %v153, %v407
    %v409 = vpop.f32.mrf.mxu0
    %v410 = vadd.f32 %v158, %v409
    %411 = vmatmul.bf16.gmra.mxu0 %v320
    %v412 = vpop.f32.mrf.mxu0
    %v413 = vadd.f32 %v163, %v412
    %v414 = vpop.f32.mrf.mxu0
    %v415 = vadd.f32 %v168, %v414
    %416 = vmatmul.bf16.gmra.mxu0 %v323
    %v417 = vpop.f32.mrf.mxu0
    %v418 = vadd.f32 %v173, %v417
    %v419 = vpop.f32.mrf.mxu0
    %v420 = vadd.f32 %v178, %v419
    %421 = vdwg.mxu0
    %422 = vmatpush.bf16.xpose.msra.mxu0 %v371
    %423 = vmatpush.bf16.xpose.msra.mxu0 %v368
    %424 = vmatpush.bf16.xpose.msra.mxu0 %v365
    %425 = vmatpush.bf16.xpose.msra.mxu0 %v362
    %426 = vmatpush.bf16.xpose.msra.mxu0 %v359
    %427 = vmatpush.bf16.xpose.msra.mxu0 %v356
    %428 = vmatpush.bf16.xpose.msra.mxu0 %v353
    %429 = vmatpush.bf16.xpose.msra.mxu0 %v350
    %430 = vmatmul.bf16.gmra.mxu0 %v302
    %v431 = vpop.f32.mrf.mxu0
    %v432 = vadd.f32 %v103, %v431
    %v433 = vpop.f32.mrf.mxu0
    %v434 = vadd.f32 %v108, %v433
    %435 = vmatmul.bf16.gmra.mxu0 %v305
    %v436 = vpop.f32.mrf.mxu0
    %v437 = vadd.f32 %v113, %v436
    %v438 = vpop.f32.mrf.mxu0
    %v439 = vadd.f32 %v118, %v438
    %440 = vmatmul.bf16.gmra.mxu0 %v308
    %v441 = vpop.f32.mrf.mxu0
    %v442 = vadd.f32 %v123, %v441
    %v443 = vpop.f32.mrf.mxu0
    %v444 = vadd.f32 %v128, %v443
    %445 = vmatmul.bf16.gmra.mxu0 %v311
    %v446 = vpop.f32.mrf.mxu0
    %v447 = vadd.f32 %v133, %v446
    %v448 = vpop.f32.mrf.mxu0
    %v449 = vadd.f32 %v138, %v448
    %450 = vmatmul.bf16.gmra.mxu0 %v314
    %v451 = vpop.f32.mrf.mxu0
    %v452 = vadd.f32 %v143, %v451
    %v453 = vpop.f32.mrf.mxu0
    %v454 = vadd.f32 %v148, %v453
    %455 = vmatmul.bf16.gmra.mxu0 %v317
    %v456 = vpop.f32.mrf.mxu0
    %v457 = vadd.f32 %v153, %v456
    %v458 = vpop.f32.mrf.mxu0
    %v459 = vadd.f32 %v158, %v458
    %460 = vmatmul.bf16.gmra.mxu0 %v320
    %v461 = vpop.f32.mrf.mxu0
    %v462 = vadd.f32 %v163, %v461
    %v463 = vpop.f32.mrf.mxu0
    %v464 = vadd.f32 %v168, %v463
    %465 = vmatmul.bf16.gmra.mxu0 %v323
    %v466 = vpop.f32.mrf.mxu0
    %v467 = vadd.f32 %v173, %v466
    %v468 = vpop.f32.mrf.mxu0
    %v469 = vadd.f32 %v178, %v468
    %470 = vdwg.mxu0
    %v471 = vmax.f32 %v383, 0.0
    %v472 = vmax.f32 %v432, 0.0
    %v473 = vmax.f32 %v385, 0.0
    %v474 = vmax.f32 %v434, 0.0
    %v475 = vmax.f32 %v388, 0.0
    %v476 = vmax.f32 %v437, 0.0
    %v477 = vmax.f32 %v390, 0.0
    %v478 = vmax.f32 %v439, 0.0
    %v479 = vmax.f32 %v393, 0.0
    %v480 = vmax.f32 %v442, 0.0
    %v481 = vmax.f32 %v395, 0.0
    %v482 = vmax.f32 %v444, 0.0
    %v483 = vmax.f32 %v398, 0.0
    %v484 = vmax.f32 %v447, 0.0
    %v485 = vmax.f32 %v400, 0.0
    %v486 = vmax.f32 %v449, 0.0
    %v487 = vmax.f32 %v403, 0.0
    %v488 = vmax.f32 %v452, 0.0
    %v489 = vmax.f32 %v405, 0.0
    %v490 = vmax.f32 %v454, 0.0
    %v491 = vmax.f32 %v408, 0.0
    %v492 = vmax.f32 %v457, 0.0
    %v493 = vmax.f32 %v410, 0.0
    %v494 = vmax.f32 %v459, 0.0
    %v495 = vmax.f32 %v413, 0.0
    %v496 = vmax.f32 %v462, 0.0
    %v497 = vmax.f32 %v415, 0.0
    %v498 = vmax.f32 %v464, 0.0
    %v499 = vmax.f32 %v418, 0.0
    %v500 = vmax.f32 %v467, 0.0
    %v501 = vmax.f32 %v420, 0.0
    %v502 = vmax.f32 %v469, 0.0
    %v503 = vpack.c.bf16 %v473, %v471
    %v504 = vpack.c.bf16 %v474, %v472
    %v505 = vpack.c.bf16 %v477, %v475
    %v506 = vpack.c.bf16 %v478, %v476
    %v507 = vpack.c.bf16 %v481, %v479
    %v508 = vpack.c.bf16 %v482, %v480
    %v509 = vpack.c.bf16 %v485, %v483
    %v510 = vpack.c.bf16 %v486, %v484
    %v511 = vpack.c.bf16 %v489, %v487
    %v512 = vpack.c.bf16 %v490, %v488
    %v513 = vpack.c.bf16 %v493, %v491
    %v514 = vpack.c.bf16 %v494, %v492
    %v515 = vpack.c.bf16 %v497, %v495
    %v516 = vpack.c.bf16 %v498, %v496
    %v517 = vpack.c.bf16 %v501, %v499
    %v518 = vpack.c.bf16 %v502, %v500
    %v519 = vld [vmem:[%s3] sm:$0xf]
    %v520 = vld [vmem:[%s3 + $0x4] sm:$0xf]
    %v521 = vld [vmem:[%s3 + $0x8] sm:$0xf]
    %v522 = vld [vmem:[%s3 + $0xc] sm:$0xf]
    %v523 = vld [vmem:[%s3 + $0x10] sm:$0xf]
    %v524 = vld [vmem:[%s3 + $0x14] sm:$0xf]
    %v525 = vld [vmem:[%s3 + $0x18] sm:$0xf]
    %v526 = vld [vmem:[%s3 + $0x1c] sm:$0xf]
    %v527 = vld [vmem:[%s4] sm:$0xff]
    %v528 = vld [vmem:[%s4 + $0x8] sm:$0xff]
    %v529 = vld [vmem:[%s4 + $0x10] sm:$0xff]
    %v530 = vld [vmem:[%s4 + $0x18] sm:$0xff]
    %v531 = vld [vmem:[%s4 + $0x20] sm:$0xff]
    %v532 = vld [vmem:[%s4 + $0x28] sm:$0xff]
    %v533 = vld [vmem:[%s4 + $0x30] sm:$0xff]
    %v534 = vld [vmem:[%s4 + $0x38] sm:$0xff]
    %536 = vset.pattern.permute.xlu0 0
    %537 = vperm.xlu0 %536, %v527
    %v538 = vpop.permute.xlu0 %537
    %541 = vset.pattern.permute.xlu0 0
    %542 = vperm.xlu0 %541, %v528
    %v543 = vpop.permute.xlu0 %542
    %546 = vset.pattern.permute.xlu0 0
    %547 = vperm.xlu0 %546, %v529
    %v548 = vpop.permute.xlu0 %547
    %551 = vset.pattern.permute.xlu0 0
    %552 = vperm.xlu0 %551, %v530
    %v553 = vpop.permute.xlu0 %552
    %556 = vset.pattern.permute.xlu0 0
    %557 = vperm.xlu0 %556, %v531
    %v558 = vpop.permute.xlu0 %557
    %561 = vset.pattern.permute.xlu0 0
    %562 = vperm.xlu0 %561, %v532
    %v563 = vpop.permute.xlu0 %562
    %566 = vset.pattern.permute.xlu0 0
    %567 = vperm.xlu0 %566, %v533
    %v568 = vpop.permute.xlu0 %567
    %571 = vset.pattern.permute.xlu0 0
    %572 = vperm.xlu0 %571, %v534
    %v573 = vpop.permute.xlu0 %572
    %v583 = vunpack.c.l.b16 %v519
    %v584 = vunpack.c.l.b16 %v520
    %v585 = vunpack.c.l.b16 %v521
    %v586 = vunpack.c.l.b16 %v522
    %v587 = vunpack.c.l.b16 %v523
    %v588 = vunpack.c.l.b16 %v524
    %v589 = vunpack.c.l.b16 %v525
    %v590 = vunpack.c.l.b16 %v526
    %v591 = vpack.c.b16 %v584, %v583
    %v592 = vpack.c.b16 %v586, %v585
    %v593 = vpack.c.b16 %v588, %v587
    %v594 = vpack.c.b16 %v590, %v589
    %599 = vmatpush.bf16.msra.mxu0 %v517
    %600 = vmatpush.bf16.msra.mxu0 %v515
    %601 = vmatpush.bf16.msra.mxu0 %v513
    %602 = vmatpush.bf16.msra.mxu0 %v511
    %603 = vmatpush.bf16.msra.mxu0 %v509
    %604 = vmatpush.bf16.msra.mxu0 %v507
    %605 = vmatpush.bf16.msra.mxu0 %v505
    %606 = vmatpush.bf16.msra.mxu0 %v503
    %607 = vmatmul.bf16.gmra.mxu0 %v591
    %v608 = vpop.f32.mrf.mxu0
    %v609 = vadd.f32 %v538, %v608
    %v610 = vpop.f32.mrf.mxu0
    %v611 = vadd.f32 %v543, %v610
    %612 = vmatmul.bf16.gmra.mxu0 %v592
    %v613 = vpop.f32.mrf.mxu0
    %v614 = vadd.f32 %v548, %v613
    %v615 = vpop.f32.mrf.mxu0
    %v616 = vadd.f32 %v553, %v615
    %617 = vmatmul.bf16.gmra.mxu0 %v593
    %v618 = vpop.f32.mrf.mxu0
    %v619 = vadd.f32 %v558, %v618
    %v620 = vpop.f32.mrf.mxu0
    %v621 = vadd.f32 %v563, %v620
    %622 = vmatmul.bf16.gmra.mxu0 %v594
    %v623 = vpop.f32.mrf.mxu0
    %v624 = vadd.f32 %v568, %v623
    %v625 = vpop.f32.mrf.mxu0
    %v626 = vadd.f32 %v573, %v625
    %627 = vdwg.mxu0
    %628 = vmatpush.bf16.msra.mxu0 %v518
    %629 = vmatpush.bf16.msra.mxu0 %v516
    %630 = vmatpush.bf16.msra.mxu0 %v514
    %631 = vmatpush.bf16.msra.mxu0 %v512
    %632 = vmatpush.bf16.msra.mxu0 %v510
    %633 = vmatpush.bf16.msra.mxu0 %v508
    %634 = vmatpush.bf16.msra.mxu0 %v506
    %635 = vmatpush.bf16.msra.mxu0 %v504
    %636 = vmatmul.bf16.gmra.mxu0 %v591
    %v637 = vpop.f32.mrf.mxu0
    %v638 = vadd.f32 %v538, %v637
    %v639 = vpop.f32.mrf.mxu0
    %v640 = vadd.f32 %v543, %v639
    %641 = vmatmul.bf16.gmra.mxu0 %v592
    %v642 = vpop.f32.mrf.mxu0
    %v643 = vadd.f32 %v548, %v642
    %v644 = vpop.f32.mrf.mxu0
    %v645 = vadd.f32 %v553, %v644
    %646 = vmatmul.bf16.gmra.mxu0 %v593
    %v647 = vpop.f32.mrf.mxu0
    %v648 = vadd.f32 %v558, %v647
    %v649 = vpop.f32.mrf.mxu0
    %v650 = vadd.f32 %v563, %v649
    %651 = vmatmul.bf16.gmra.mxu0 %v594
    %v652 = vpop.f32.mrf.mxu0
    %v653 = vadd.f32 %v568, %v652
    %v654 = vpop.f32.mrf.mxu0
    %v655 = vadd.f32 %v573, %v654
    %656 = vdwg.mxu0
    %v657 = vmax.f32 %v609, 0.0
    %v658 = vmax.f32 %v638, 0.0
    %v659 = vmax.f32 %v611, 0.0
    %v660 = vmax.f32 %v640, 0.0
    %v661 = vmax.f32 %v614, 0.0
    %v662 = vmax.f32 %v643, 0.0
    %v663 = vmax.f32 %v616, 0.0
    %v664 = vmax.f32 %v645, 0.0
    %v665 = vmax.f32 %v619, 0.0
    %v666 = vmax.f32 %v648, 0.0
    %v667 = vmax.f32 %v621, 0.0
    %v668 = vmax.f32 %v650, 0.0
    %v669 = vmax.f32 %v624, 0.0
    %v670 = vmax.f32 %v653, 0.0
    %v671 = vmax.f32 %v626, 0.0
    %v672 = vmax.f32 %v655, 0.0
    %v673 = vpack.c.bf16 %v659, %v657
    %v674 = vpack.c.bf16 %v660, %v658
    %v675 = vpack.c.bf16 %v663, %v661
    %v676 = vpack.c.bf16 %v664, %v662
    %v677 = vpack.c.bf16 %v667, %v665
    %v678 = vpack.c.bf16 %v668, %v666
    %v679 = vpack.c.bf16 %v671, %v669
    %v680 = vpack.c.bf16 %v672, %v670
    %v681 = vld [vmem:[%s5] sm:$0xf]
    %v682 = vld [vmem:[%s5 + $0x4] sm:$0xf]
    %v683 = vld [vmem:[%s5 + $0x8] sm:$0xf]
    %v684 = vld [vmem:[%s5 + $0xc] sm:$0xf]
    %v685 = vld [vmem:[%s5 + $0x10] sm:$0xf]
    %v686 = vld [vmem:[%s5 + $0x14] sm:$0xf]
    %v687 = vld [vmem:[%s5 + $0x18] sm:$0xf]
    %v688 = vld [vmem:[%s5 + $0x1c] sm:$0xf]
    %v689 = vld [vmem:[%s5 + $0x20] sm:$0xf]
    %v690 = vld [vmem:[%s5 + $0x24] sm:$0xf]
    %v691 = vld [vmem:[%s5 + $0x28] sm:$0xf]
    %v692 = vld [vmem:[%s5 + $0x2c] sm:$0xf]
    %v693 = vld [vmem:[%s5 + $0x30] sm:$0xf]
    %v694 = vld [vmem:[%s5 + $0x34] sm:$0xf]
    %v695 = vld [vmem:[%s5 + $0x38] sm:$0xf]
    %v696 = vld [vmem:[%s5 + $0x3c] sm:$0xf]
    %v697 = vld [vmem:[%s6] sm:$0xff]
    %v698 = vld [vmem:[%s6 + $0x8] sm:$0xff]
    %v699 = vld [vmem:[%s6 + $0x10] sm:$0xff]
    %v700 = vld [vmem:[%s6 + $0x18] sm:$0xff]
    %v701 = vld [vmem:[%s6 + $0x20] sm:$0xff]
    %v702 = vld [vmem:[%s6 + $0x28] sm:$0xff]
    %v703 = vld [vmem:[%s6 + $0x30] sm:$0xff]
    %v704 = vld [vmem:[%s6 + $0x38] sm:$0xff]
    %v705 = vld [vmem:[%s6 + $0x40] sm:$0xff]
    %v706 = vld [vmem:[%s6 + $0x48] sm:$0xff]
    %v707 = vld [vmem:[%s6 + $0x50] sm:$0xff]
    %v708 = vld [vmem:[%s6 + $0x58] sm:$0xff]
    %v709 = vld [vmem:[%s6 + $0x60] sm:$0xff]
    %v710 = vld [vmem:[%s6 + $0x68] sm:$0xff]
    %v711 = vld [vmem:[%s6 + $0x70] sm:$0xff]
    %v712 = vld [vmem:[%s6 + $0x78] sm:$0xff]
    %714 = vset.pattern.permute.xlu0 0
    %715 = vperm.xlu0 %714, %v697
    %v716 = vpop.permute.xlu0 %715
    %719 = vset.pattern.permute.xlu0 0
    %720 = vperm.xlu0 %719, %v698
    %v721 = vpop.permute.xlu0 %720
    %724 = vset.pattern.permute.xlu0 0
    %725 = vperm.xlu0 %724, %v699
    %v726 = vpop.permute.xlu0 %725
    %729 = vset.pattern.permute.xlu0 0
    %730 = vperm.xlu0 %729, %v700
    %v731 = vpop.permute.xlu0 %730
    %734 = vset.pattern.permute.xlu0 0
    %735 = vperm.xlu0 %734, %v701
    %v736 = vpop.permute.xlu0 %735
    %739 = vset.pattern.permute.xlu0 0
    %740 = vperm.xlu0 %739, %v702
    %v741 = vpop.permute.xlu0 %740
    %744 = vset.pattern.permute.xlu0 0
    %745 = vperm.xlu0 %744, %v703
    %v746 = vpop.permute.xlu0 %745
    %749 = vset.pattern.permute.xlu0 0
    %750 = vperm.xlu0 %749, %v704
    %v751 = vpop.permute.xlu0 %750
    %754 = vset.pattern.permute.xlu0 0
    %755 = vperm.xlu0 %754, %v705
    %v756 = vpop.permute.xlu0 %755
    %759 = vset.pattern.permute.xlu0 0
    %760 = vperm.xlu0 %759, %v706
    %v761 = vpop.permute.xlu0 %760
    %764 = vset.pattern.permute.xlu0 0
    %765 = vperm.xlu0 %764, %v707
    %v766 = vpop.permute.xlu0 %765
    %769 = vset.pattern.permute.xlu0 0
    %770 = vperm.xlu0 %769, %v708
    %v771 = vpop.permute.xlu0 %770
    %774 = vset.pattern.permute.xlu0 0
    %775 = vperm.xlu0 %774, %v709
    %v776 = vpop.permute.xlu0 %775
    %779 = vset.pattern.permute.xlu0 0
    %780 = vperm.xlu0 %779, %v710
    %v781 = vpop.permute.xlu0 %780
    %784 = vset.pattern.permute.xlu0 0
    %785 = vperm.xlu0 %784, %v711
    %v786 = vpop.permute.xlu0 %785
    %789 = vset.pattern.permute.xlu0 0
    %790 = vperm.xlu0 %789, %v712
    %v791 = vpop.permute.xlu0 %790
    %v809 = vunpack.c.l.b16 %v681
    %v810 = vunpack.c.l.b16 %v682
    %v811 = vunpack.c.l.b16 %v683
    %v812 = vunpack.c.l.b16 %v684
    %v813 = vunpack.c.l.b16 %v685
    %v814 = vunpack.c.l.b16 %v686
    %v815 = vunpack.c.l.b16 %v687
    %v816 = vunpack.c.l.b16 %v688
    %v817 = vunpack.c.l.b16 %v689
    %v818 = vunpack.c.l.b16 %v690
    %v819 = vunpack.c.l.b16 %v691
    %v820 = vunpack.c.l.b16 %v692
    %v821 = vunpack.c.l.b16 %v693
    %v822 = vunpack.c.l.b16 %v694
    %v823 = vunpack.c.l.b16 %v695
    %v824 = vunpack.c.l.b16 %v696
    %v825 = vpack.c.b16 %v810, %v809
    %v826 = vpack.c.b16 %v812, %v811
    %v827 = vpack.c.b16 %v814, %v813
    %v828 = vpack.c.b16 %v816, %v815
    %v829 = vpack.c.b16 %v818, %v817
    %v830 = vpack.c.b16 %v820, %v819
    %v831 = vpack.c.b16 %v822, %v821
    %v832 = vpack.c.b16 %v824, %v823
    %vm833 = vcmask 523264
    %v835 = vsel %vm833, %v825, 0
    %v838 = vsel %vm833, %v826, 0
    %v841 = vsel %vm833, %v827, 0
    %v844 = vsel %vm833, %v828, 0
    %v847 = vsel %vm833, %v829, 0
    %v850 = vsel %vm833, %v830, 0
    %v853 = vsel %vm833, %v831, 0
    %v856 = vsel %vm833, %v832, 0
    %858 = vmatpush.bf16.msra.mxu0 0
    %859 = vmatpush.bf16.msra.mxu0 0
    %860 = vmatpush.bf16.msra.mxu0 0
    %861 = vmatpush.bf16.msra.mxu0 0
    %862 = vmatpush.bf16.msra.mxu0 %v679
    %863 = vmatpush.bf16.msra.mxu0 %v677
    %864 = vmatpush.bf16.msra.mxu0 %v675
    %865 = vmatpush.bf16.msra.mxu0 %v673
    %866 = vmatmul.bf16.gmra.mxu0 %v835
    %v867 = vpop.f32.mrf.mxu0
    %v868 = vadd.f32 %v716, %v867
    %v869 = vpop.f32.mrf.mxu0
    %v870 = vadd.f32 %v721, %v869
    %871 = vmatmul.bf16.gmra.mxu0 %v838
    %v872 = vpop.f32.mrf.mxu0
    %v873 = vadd.f32 %v726, %v872
    %v874 = vpop.f32.mrf.mxu0
    %v875 = vadd.f32 %v731, %v874
    %876 = vmatmul.bf16.gmra.mxu0 %v841
    %v877 = vpop.f32.mrf.mxu0
    %v878 = vadd.f32 %v736, %v877
    %v879 = vpop.f32.mrf.mxu0
    %v880 = vadd.f32 %v741, %v879
    %881 = vmatmul.bf16.gmra.mxu0 %v844
    %v882 = vpop.f32.mrf.mxu0
    %v883 = vadd.f32 %v746, %v882
    %v884 = vpop.f32.mrf.mxu0
    %v885 = vadd.f32 %v751, %v884
    %886 = vmatmul.bf16.gmra.mxu0 %v847
    %v887 = vpop.f32.mrf.mxu0
    %v888 = vadd.f32 %v756, %v887
    %v889 = vpop.f32.mrf.mxu0
    %v890 = vadd.f32 %v761, %v889
    %891 = vmatmul.bf16.gmra.mxu0 %v850
    %v892 = vpop.f32.mrf.mxu0
    %v893 = vadd.f32 %v766, %v892
    %v894 = vpop.f32.mrf.mxu0
    %v895 = vadd.f32 %v771, %v894
    %896 = vmatmul.bf16.gmra.mxu0 %v853
    %v897 = vpop.f32.mrf.mxu0
    %v898 = vadd.f32 %v776, %v897
    %v899 = vpop.f32.mrf.mxu0
    %v900 = vadd.f32 %v781, %v899
    %901 = vmatmul.bf16.gmra.mxu0 %v856
    %v902 = vpop.f32.mrf.mxu0
    %v903 = vadd.f32 %v786, %v902
    %v904 = vpop.f32.mrf.mxu0
    %v905 = vadd.f32 %v791, %v904
    %906 = vdwg.mxu0
    %907 = vmatpush.bf16.msra.mxu0 0
    %908 = vmatpush.bf16.msra.mxu0 0
    %909 = vmatpush.bf16.msra.mxu0 0
    %910 = vmatpush.bf16.msra.mxu0 0
    %911 = vmatpush.bf16.msra.mxu0 %v680
    %912 = vmatpush.bf16.msra.mxu0 %v678
    %913 = vmatpush.bf16.msra.mxu0 %v676
    %914 = vmatpush.bf16.msra.mxu0 %v674
    %915 = vmatmul.bf16.gmra.mxu0 %v835
    %v916 = vpop.f32.mrf.mxu0
    %v917 = vadd.f32 %v716, %v916
    %v918 = vpop.f32.mrf.mxu0
    %v919 = vadd.f32 %v721, %v918
    %920 = vmatmul.bf16.gmra.mxu0 %v838
    %v921 = vpop.f32.mrf.mxu0
    %v922 = vadd.f32 %v726, %v921
    %v923 = vpop.f32.mrf.mxu0
    %v924 = vadd.f32 %v731, %v923
    %925 = vmatmul.bf16.gmra.mxu0 %v841
    %v926 = vpop.f32.mrf.mxu0
    %v927 = vadd.f32 %v736, %v926
    %v928 = vpop.f32.mrf.mxu0
    %v929 = vadd.f32 %v741, %v928
    %930 = vmatmul.bf16.gmra.mxu0 %v844
    %v931 = vpop.f32.mrf.mxu0
    %v932 = vadd.f32 %v746, %v931
    %v933 = vpop.f32.mrf.mxu0
    %v934 = vadd.f32 %v751, %v933
    %935 = vmatmul.bf16.gmra.mxu0 %v847
    %v936 = vpop.f32.mrf.mxu0
    %v937 = vadd.f32 %v756, %v936
    %v938 = vpop.f32.mrf.mxu0
    %v939 = vadd.f32 %v761, %v938
    %940 = vmatmul.bf16.gmra.mxu0 %v850
    %v941 = vpop.f32.mrf.mxu0
    %v942 = vadd.f32 %v766, %v941
    %v943 = vpop.f32.mrf.mxu0
    %v944 = vadd.f32 %v771, %v943
    %945 = vmatmul.bf16.gmra.mxu0 %v853
    %v946 = vpop.f32.mrf.mxu0
    %v947 = vadd.f32 %v776, %v946
    %v948 = vpop.f32.mrf.mxu0
    %v949 = vadd.f32 %v781, %v948
    %950 = vmatmul.bf16.gmra.mxu0 %v856
    %v951 = vpop.f32.mrf.mxu0
    %v952 = vadd.f32 %v786, %v951
    %v953 = vpop.f32.mrf.mxu0
    %v954 = vadd.f32 %v791, %v953
    %955 = vdwg.mxu0
    %v956 = vmax.f32 %v868, 0.0
    %v957 = vmax.f32 %v917, 0.0
    %v958 = vmax.f32 %v870, 0.0
    %v959 = vmax.f32 %v919, 0.0
    %v960 = vmax.f32 %v873, 0.0
    %v961 = vmax.f32 %v922, 0.0
    %v962 = vmax.f32 %v875, 0.0
    %v963 = vmax.f32 %v924, 0.0
    %v964 = vmax.f32 %v878, 0.0
    %v965 = vmax.f32 %v927, 0.0
    %v966 = vmax.f32 %v880, 0.0
    %v967 = vmax.f32 %v929, 0.0
    %v968 = vmax.f32 %v883, 0.0
    %v969 = vmax.f32 %v932, 0.0
    %v970 = vmax.f32 %v885, 0.0
    %v971 = vmax.f32 %v934, 0.0
    %v972 = vmax.f32 %v888, 0.0
    %v973 = vmax.f32 %v937, 0.0
    %v974 = vmax.f32 %v890, 0.0
    %v975 = vmax.f32 %v939, 0.0
    %v976 = vmax.f32 %v893, 0.0
    %v977 = vmax.f32 %v942, 0.0
    %v978 = vmax.f32 %v895, 0.0
    %v979 = vmax.f32 %v944, 0.0
    %v980 = vmax.f32 %v898, 0.0
    %v981 = vmax.f32 %v947, 0.0
    %v982 = vmax.f32 %v900, 0.0
    %v983 = vmax.f32 %v949, 0.0
    %v984 = vmax.f32 %v903, 0.0
    %v985 = vmax.f32 %v952, 0.0
    %v986 = vmax.f32 %v905, 0.0
    %v987 = vmax.f32 %v954, 0.0
    %v988 = vpack.c.bf16 %v958, %v956
    %v989 = vpack.c.bf16 %v959, %v957
    %v990 = vpack.c.bf16 %v962, %v960
    %v991 = vpack.c.bf16 %v963, %v961
    %v992 = vpack.c.bf16 %v966, %v964
    %v993 = vpack.c.bf16 %v967, %v965
    %v994 = vpack.c.bf16 %v970, %v968
    %v995 = vpack.c.bf16 %v971, %v969
    %v996 = vpack.c.bf16 %v974, %v972
    %v997 = vpack.c.bf16 %v975, %v973
    %v998 = vpack.c.bf16 %v978, %v976
    %v999 = vpack.c.bf16 %v979, %v977
    %v1000 = vpack.c.bf16 %v982, %v980
    %v1001 = vpack.c.bf16 %v983, %v981
    %v1002 = vpack.c.bf16 %v986, %v984
    %v1003 = vpack.c.bf16 %v987, %v985
    %v1004 = vld [vmem:[%s7] sm:$0xf]
    %v1005 = vld [vmem:[%s7 + $0x4] sm:$0xf]
    %v1006 = vld [vmem:[%s7 + $0x8] sm:$0xf]
    %v1007 = vld [vmem:[%s7 + $0xc] sm:$0xf]
    %v1008 = vld [vmem:[%s7 + $0x10] sm:$0xf]
    %v1009 = vld [vmem:[%s7 + $0x14] sm:$0xf]
    %v1010 = vld [vmem:[%s7 + $0x18] sm:$0xf]
    %v1011 = vld [vmem:[%s7 + $0x1c] sm:$0xf]
    %v1012 = vld [vmem:[%s7 + $0x20] sm:$0xf]
    %v1013 = vld [vmem:[%s7 + $0x24] sm:$0xf]
    %v1014 = vld [vmem:[%s7 + $0x28] sm:$0xf]
    %v1015 = vld [vmem:[%s7 + $0x2c] sm:$0xf]
    %v1016 = vld [vmem:[%s7 + $0x30] sm:$0xf]
    %v1017 = vld [vmem:[%s7 + $0x34] sm:$0xf]
    %v1018 = vld [vmem:[%s7 + $0x38] sm:$0xf]
    %v1019 = vld [vmem:[%s7 + $0x3c] sm:$0xf]
    %s1020 = scalar_lea.vmem %s5, 64
    %v1021 = vld [vmem:[%s1020] sm:$0xf]
    %v1022 = vld [vmem:[%s1020 + $0x4] sm:$0xf]
    %v1023 = vld [vmem:[%s1020 + $0x8] sm:$0xf]
    %v1024 = vld [vmem:[%s1020 + $0xc] sm:$0xf]
    %v1025 = vld [vmem:[%s1020 + $0x10] sm:$0xf]
    %v1026 = vld [vmem:[%s1020 + $0x14] sm:$0xf]
    %v1027 = vld [vmem:[%s1020 + $0x18] sm:$0xf]
    %v1028 = vld [vmem:[%s1020 + $0x1c] sm:$0xf]
    %v1029 = vld [vmem:[%s1020 + $0x20] sm:$0xf]
    %v1030 = vld [vmem:[%s1020 + $0x24] sm:$0xf]
    %v1031 = vld [vmem:[%s1020 + $0x28] sm:$0xf]
    %v1032 = vld [vmem:[%s1020 + $0x2c] sm:$0xf]
    %v1033 = vld [vmem:[%s1020 + $0x30] sm:$0xf]
    %v1034 = vld [vmem:[%s1020 + $0x34] sm:$0xf]
    %v1035 = vld [vmem:[%s1020 + $0x38] sm:$0xf]
    %v1036 = vld [vmem:[%s1020 + $0x3c] sm:$0xf]
    %s1037 = scalar_lea.vmem %s6, 128
    %v1038 = vld [vmem:[%s1037] sm:$0xff]
    %v1039 = vld [vmem:[%s1037 + $0x8] sm:$0xff]
    %v1040 = vld [vmem:[%s1037 + $0x10] sm:$0xff]
    %v1041 = vld [vmem:[%s1037 + $0x18] sm:$0xff]
    %v1042 = vld [vmem:[%s1037 + $0x20] sm:$0xff]
    %v1043 = vld [vmem:[%s1037 + $0x28] sm:$0xff]
    %v1044 = vld [vmem:[%s1037 + $0x30] sm:$0xff]
    %v1045 = vld [vmem:[%s1037 + $0x38] sm:$0xff]
    %v1046 = vld [vmem:[%s1037 + $0x40] sm:$0xff]
    %v1047 = vld [vmem:[%s1037 + $0x48] sm:$0xff]
    %v1048 = vld [vmem:[%s1037 + $0x50] sm:$0xff]
    %v1049 = vld [vmem:[%s1037 + $0x58] sm:$0xff]
    %v1050 = vld [vmem:[%s1037 + $0x60] sm:$0xff]
    %v1051 = vld [vmem:[%s1037 + $0x68] sm:$0xff]
    %v1052 = vld [vmem:[%s1037 + $0x70] sm:$0xff]
    %v1053 = vld [vmem:[%s1037 + $0x78] sm:$0xff]
    %1055 = vset.pattern.permute.xlu0 0
    %1056 = vperm.xlu0 %1055, %v1038
    %v1057 = vpop.permute.xlu0 %1056
    %1060 = vset.pattern.permute.xlu0 0
    %1061 = vperm.xlu0 %1060, %v1039
    %v1062 = vpop.permute.xlu0 %1061
    %1065 = vset.pattern.permute.xlu0 0
    %1066 = vperm.xlu0 %1065, %v1040
    %v1067 = vpop.permute.xlu0 %1066
    %1070 = vset.pattern.permute.xlu0 0
    %1071 = vperm.xlu0 %1070, %v1041
    %v1072 = vpop.permute.xlu0 %1071
    %1075 = vset.pattern.permute.xlu0 0
    %1076 = vperm.xlu0 %1075, %v1042
    %v1077 = vpop.permute.xlu0 %1076
    %1080 = vset.pattern.permute.xlu0 0
    %1081 = vperm.xlu0 %1080, %v1043
    %v1082 = vpop.permute.xlu0 %1081
    %1085 = vset.pattern.permute.xlu0 0
    %1086 = vperm.xlu0 %1085, %v1044
    %v1087 = vpop.permute.xlu0 %1086
    %1090 = vset.pattern.permute.xlu0 0
    %1091 = vperm.xlu0 %1090, %v1045
    %v1092 = vpop.permute.xlu0 %1091
    %1095 = vset.pattern.permute.xlu0 0
    %1096 = vperm.xlu0 %1095, %v1046
    %v1097 = vpop.permute.xlu0 %1096
    %1100 = vset.pattern.permute.xlu0 0
    %1101 = vperm.xlu0 %1100, %v1047
    %v1102 = vpop.permute.xlu0 %1101
    %1105 = vset.pattern.permute.xlu0 0
    %1106 = vperm.xlu0 %1105, %v1048
    %v1107 = vpop.permute.xlu0 %1106
    %1110 = vset.pattern.permute.xlu0 0
    %1111 = vperm.xlu0 %1110, %v1049
    %v1112 = vpop.permute.xlu0 %1111
    %1115 = vset.pattern.permute.xlu0 0
    %1116 = vperm.xlu0 %1115, %v1050
    %v1117 = vpop.permute.xlu0 %1116
    %1120 = vset.pattern.permute.xlu0 0
    %1121 = vperm.xlu0 %1120, %v1051
    %v1122 = vpop.permute.xlu0 %1121
    %1125 = vset.pattern.permute.xlu0 0
    %1126 = vperm.xlu0 %1125, %v1052
    %v1127 = vpop.permute.xlu0 %1126
    %1130 = vset.pattern.permute.xlu0 0
    %1131 = vperm.xlu0 %1130, %v1053
    %v1132 = vpop.permute.xlu0 %1131
    %v1150 = vunpack.c.l.b16 %v1021
    %v1151 = vunpack.c.l.b16 %v1022
    %v1152 = vunpack.c.l.b16 %v1023
    %v1153 = vunpack.c.l.b16 %v1024
    %v1154 = vunpack.c.l.b16 %v1025
    %v1155 = vunpack.c.l.b16 %v1026
    %v1156 = vunpack.c.l.b16 %v1027
    %v1157 = vunpack.c.l.b16 %v1028
    %v1158 = vunpack.c.l.b16 %v1029
    %v1159 = vunpack.c.l.b16 %v1030
    %v1160 = vunpack.c.l.b16 %v1031
    %v1161 = vunpack.c.l.b16 %v1032
    %v1162 = vunpack.c.l.b16 %v1033
    %v1163 = vunpack.c.l.b16 %v1034
    %v1164 = vunpack.c.l.b16 %v1035
    %v1165 = vunpack.c.l.b16 %v1036
    %v1166 = vpack.c.b16 %v1151, %v1150
    %v1167 = vpack.c.b16 %v1153, %v1152
    %v1168 = vpack.c.b16 %v1155, %v1154
    %v1169 = vpack.c.b16 %v1157, %v1156
    %v1170 = vpack.c.b16 %v1159, %v1158
    %v1171 = vpack.c.b16 %v1161, %v1160
    %v1172 = vpack.c.b16 %v1163, %v1162
    %v1173 = vpack.c.b16 %v1165, %v1164
    %v1175 = vsel %vm833, %v1166, 0
    %v1178 = vsel %vm833, %v1167, 0
    %v1181 = vsel %vm833, %v1168, 0
    %v1184 = vsel %vm833, %v1169, 0
    %v1187 = vsel %vm833, %v1170, 0
    %v1190 = vsel %vm833, %v1171, 0
    %v1193 = vsel %vm833, %v1172, 0
    %v1196 = vsel %vm833, %v1173, 0
    %1198 = vmatpush.bf16.msra.mxu0 0
    %1199 = vmatpush.bf16.msra.mxu0 0
    %1200 = vmatpush.bf16.msra.mxu0 0
    %1201 = vmatpush.bf16.msra.mxu0 0
    %1202 = vmatpush.bf16.msra.mxu0 %v679
    %1203 = vmatpush.bf16.msra.mxu0 %v677
    %1204 = vmatpush.bf16.msra.mxu0 %v675
    %1205 = vmatpush.bf16.msra.mxu0 %v673
    %1206 = vmatmul.bf16.gmra.mxu0 %v1175
    %v1207 = vpop.f32.mrf.mxu0
    %v1208 = vadd.f32 %v1057, %v1207
    %v1209 = vpop.f32.mrf.mxu0
    %v1210 = vadd.f32 %v1062, %v1209
    %1211 = vmatmul.bf16.gmra.mxu0 %v1178
    %v1212 = vpop.f32.mrf.mxu0
    %v1213 = vadd.f32 %v1067, %v1212
    %v1214 = vpop.f32.mrf.mxu0
    %v1215 = vadd.f32 %v1072, %v1214
    %1216 = vmatmul.bf16.gmra.mxu0 %v1181
    %v1217 = vpop.f32.mrf.mxu0
    %v1218 = vadd.f32 %v1077, %v1217
    %v1219 = vpop.f32.mrf.mxu0
    %v1220 = vadd.f32 %v1082, %v1219
    %1221 = vmatmul.bf16.gmra.mxu0 %v1184
    %v1222 = vpop.f32.mrf.mxu0
    %v1223 = vadd.f32 %v1087, %v1222
    %v1224 = vpop.f32.mrf.mxu0
    %v1225 = vadd.f32 %v1092, %v1224
    %1226 = vmatmul.bf16.gmra.mxu0 %v1187
    %v1227 = vpop.f32.mrf.mxu0
    %v1228 = vadd.f32 %v1097, %v1227
    %v1229 = vpop.f32.mrf.mxu0
    %v1230 = vadd.f32 %v1102, %v1229
    %1231 = vmatmul.bf16.gmra.mxu0 %v1190
    %v1232 = vpop.f32.mrf.mxu0
    %v1233 = vadd.f32 %v1107, %v1232
    %v1234 = vpop.f32.mrf.mxu0
    %v1235 = vadd.f32 %v1112, %v1234
    %1236 = vmatmul.bf16.gmra.mxu0 %v1193
    %v1237 = vpop.f32.mrf.mxu0
    %v1238 = vadd.f32 %v1117, %v1237
    %v1239 = vpop.f32.mrf.mxu0
    %v1240 = vadd.f32 %v1122, %v1239
    %1241 = vmatmul.bf16.gmra.mxu0 %v1196
    %v1242 = vpop.f32.mrf.mxu0
    %v1243 = vadd.f32 %v1127, %v1242
    %v1244 = vpop.f32.mrf.mxu0
    %v1245 = vadd.f32 %v1132, %v1244
    %1246 = vdwg.mxu0
    %1247 = vmatpush.bf16.msra.mxu0 0
    %1248 = vmatpush.bf16.msra.mxu0 0
    %1249 = vmatpush.bf16.msra.mxu0 0
    %1250 = vmatpush.bf16.msra.mxu0 0
    %1251 = vmatpush.bf16.msra.mxu0 %v680
    %1252 = vmatpush.bf16.msra.mxu0 %v678
    %1253 = vmatpush.bf16.msra.mxu0 %v676
    %1254 = vmatpush.bf16.msra.mxu0 %v674
    %1255 = vmatmul.bf16.gmra.mxu0 %v1175
    %v1256 = vpop.f32.mrf.mxu0
    %v1257 = vadd.f32 %v1057, %v1256
    %v1258 = vpop.f32.mrf.mxu0
    %v1259 = vadd.f32 %v1062, %v1258
    %1260 = vmatmul.bf16.gmra.mxu0 %v1178
    %v1261 = vpop.f32.mrf.mxu0
    %v1262 = vadd.f32 %v1067, %v1261
    %v1263 = vpop.f32.mrf.mxu0
    %v1264 = vadd.f32 %v1072, %v1263
    %1265 = vmatmul.bf16.gmra.mxu0 %v1181
    %v1266 = vpop.f32.mrf.mxu0
    %v1267 = vadd.f32 %v1077, %v1266
    %v1268 = vpop.f32.mrf.mxu0
    %v1269 = vadd.f32 %v1082, %v1268
    %1270 = vmatmul.bf16.gmra.mxu0 %v1184
    %v1271 = vpop.f32.mrf.mxu0
    %v1272 = vadd.f32 %v1087, %v1271
    %v1273 = vpop.f32.mrf.mxu0
    %v1274 = vadd.f32 %v1092, %v1273
    %1275 = vmatmul.bf16.gmra.mxu0 %v1187
    %v1276 = vpop.f32.mrf.mxu0
    %v1277 = vadd.f32 %v1097, %v1276
    %v1278 = vpop.f32.mrf.mxu0
    %v1279 = vadd.f32 %v1102, %v1278
    %1280 = vmatmul.bf16.gmra.mxu0 %v1190
    %v1281 = vpop.f32.mrf.mxu0
    %v1282 = vadd.f32 %v1107, %v1281
    %v1283 = vpop.f32.mrf.mxu0
    %v1284 = vadd.f32 %v1112, %v1283
    %1285 = vmatmul.bf16.gmra.mxu0 %v1193
    %v1286 = vpop.f32.mrf.mxu0
    %v1287 = vadd.f32 %v1117, %v1286
    %v1288 = vpop.f32.mrf.mxu0
    %v1289 = vadd.f32 %v1122, %v1288
    %1290 = vmatmul.bf16.gmra.mxu0 %v1196
    %v1291 = vpop.f32.mrf.mxu0
    %v1292 = vadd.f32 %v1127, %v1291
    %v1293 = vpop.f32.mrf.mxu0
    %v1294 = vadd.f32 %v1132, %v1293
    %1295 = vdwg.mxu0
    %v1296 = vmax.f32 %v1208, 0.0
    %v1297 = vmax.f32 %v1257, 0.0
    %v1298 = vmax.f32 %v1210, 0.0
    %v1299 = vmax.f32 %v1259, 0.0
    %v1300 = vmax.f32 %v1213, 0.0
    %v1301 = vmax.f32 %v1262, 0.0
    %v1302 = vmax.f32 %v1215, 0.0
    %v1303 = vmax.f32 %v1264, 0.0
    %v1304 = vmax.f32 %v1218, 0.0
    %v1305 = vmax.f32 %v1267, 0.0
    %v1306 = vmax.f32 %v1220, 0.0
    %v1307 = vmax.f32 %v1269, 0.0
    %v1308 = vmax.f32 %v1223, 0.0
    %v1309 = vmax.f32 %v1272, 0.0
    %v1310 = vmax.f32 %v1225, 0.0
    %v1311 = vmax.f32 %v1274, 0.0
    %v1312 = vmax.f32 %v1228, 0.0
    %v1313 = vmax.f32 %v1277, 0.0
    %v1314 = vmax.f32 %v1230, 0.0
    %v1315 = vmax.f32 %v1279, 0.0
    %v1316 = vmax.f32 %v1233, 0.0
    %v1317 = vmax.f32 %v1282, 0.0
    %v1318 = vmax.f32 %v1235, 0.0
    %v1319 = vmax.f32 %v1284, 0.0
    %v1320 = vmax.f32 %v1238, 0.0
    %v1321 = vmax.f32 %v1287, 0.0
    %v1322 = vmax.f32 %v1240, 0.0
    %v1323 = vmax.f32 %v1289, 0.0
    %v1324 = vmax.f32 %v1243, 0.0
    %v1325 = vmax.f32 %v1292, 0.0
    %v1326 = vmax.f32 %v1245, 0.0
    %v1327 = vmax.f32 %v1294, 0.0
    %v1328 = vpack.c.bf16 %v1298, %v1296
    %v1329 = vpack.c.bf16 %v1299, %v1297
    %v1330 = vpack.c.bf16 %v1302, %v1300
    %v1331 = vpack.c.bf16 %v1303, %v1301
    %v1332 = vpack.c.bf16 %v1306, %v1304
    %v1333 = vpack.c.bf16 %v1307, %v1305
    %v1334 = vpack.c.bf16 %v1310, %v1308
    %v1335 = vpack.c.bf16 %v1311, %v1309
    %v1336 = vpack.c.bf16 %v1314, %v1312
    %v1337 = vpack.c.bf16 %v1315, %v1313
    %v1338 = vpack.c.bf16 %v1318, %v1316
    %v1339 = vpack.c.bf16 %v1319, %v1317
    %v1340 = vpack.c.bf16 %v1322, %v1320
    %v1341 = vpack.c.bf16 %v1323, %v1321
    %v1342 = vpack.c.bf16 %v1326, %v1324
    %v1343 = vpack.c.bf16 %v1327, %v1325
    %s1344 = scalar_lea.vmem %s7, 64
    %v1345 = vld [vmem:[%s1344] sm:$0xf]
    %v1346 = vld [vmem:[%s1344 + $0x4] sm:$0xf]
    %v1347 = vld [vmem:[%s1344 + $0x8] sm:$0xf]
    %v1348 = vld [vmem:[%s1344 + $0xc] sm:$0xf]
    %v1349 = vld [vmem:[%s1344 + $0x10] sm:$0xf]
    %v1350 = vld [vmem:[%s1344 + $0x14] sm:$0xf]
    %v1351 = vld [vmem:[%s1344 + $0x18] sm:$0xf]
    %v1352 = vld [vmem:[%s1344 + $0x1c] sm:$0xf]
    %v1353 = vld [vmem:[%s1344 + $0x20] sm:$0xf]
    %v1354 = vld [vmem:[%s1344 + $0x24] sm:$0xf]
    %v1355 = vld [vmem:[%s1344 + $0x28] sm:$0xf]
    %v1356 = vld [vmem:[%s1344 + $0x2c] sm:$0xf]
    %v1357 = vld [vmem:[%s1344 + $0x30] sm:$0xf]
    %v1358 = vld [vmem:[%s1344 + $0x34] sm:$0xf]
    %v1359 = vld [vmem:[%s1344 + $0x38] sm:$0xf]
    %v1360 = vld [vmem:[%s1344 + $0x3c] sm:$0xf]
    %v1377 = vunpack.c.l.b16 %v1345
    %v1378 = vunpack.c.l.b16 %v1346
    %v1379 = vunpack.c.l.b16 %v1347
    %v1380 = vunpack.c.l.b16 %v1348
    %v1381 = vunpack.c.l.b16 %v1349
    %v1382 = vunpack.c.l.b16 %v1350
    %v1383 = vunpack.c.l.b16 %v1351
    %v1384 = vunpack.c.l.b16 %v1352
    %v1385 = vunpack.c.l.b16 %v1353
    %v1386 = vunpack.c.l.b16 %v1354
    %v1387 = vunpack.c.l.b16 %v1355
    %v1388 = vunpack.c.l.b16 %v1356
    %v1389 = vunpack.c.l.b16 %v1357
    %v1390 = vunpack.c.l.b16 %v1358
    %v1391 = vunpack.c.l.b16 %v1359
    %v1392 = vunpack.c.l.b16 %v1360
    %v1393 = vpack.c.b16 %v1378, %v1377
    %v1394 = vpack.c.b16 %v1380, %v1379
    %v1395 = vpack.c.b16 %v1382, %v1381
    %v1396 = vpack.c.b16 %v1384, %v1383
    %v1397 = vpack.c.b16 %v1386, %v1385
    %v1398 = vpack.c.b16 %v1388, %v1387
    %v1399 = vpack.c.b16 %v1390, %v1389
    %v1400 = vpack.c.b16 %v1392, %v1391
    %1409 = vxpose.xlu0.c.b16.start [1/8] %v1393, 128
    %1410 = vxpose.xlu0.c.b16.cont [2/8] %v1394, 128
    %1411 = vxpose.xlu0.c.b16.cont [3/8] %v1395, 128
    %1412 = vxpose.xlu0.c.b16.cont [4/8] %v1396, 128
    %1413 = vxpose.xlu0.c.b16.cont [5/8] %v1397, 128
    %1414 = vxpose.xlu0.c.b16.cont [6/8] %v1398, 128
    %1415 = vxpose.xlu0.c.b16.cont [7/8] %v1399, 128
    %1416 = vxpose.xlu0.c.b16.end [8/8] %v1400, 128
    %v1417 = vpop.trf.xlu0
    %v1418 = vpop.trf.xlu0
    %v1419 = vpop.trf.xlu0
    %v1420 = vpop.trf.xlu0
    %v1421 = vpop.trf.xlu0
    %v1422 = vpop.trf.xlu0
    %v1423 = vpop.trf.xlu0
    %v1424 = vpop.trf.xlu0
    %1425 = vmatpush.bf16.msra.mxu0 %v1342
    %1426 = vmatpush.bf16.msra.mxu0 %v1340
    %1427 = vmatpush.bf16.msra.mxu0 %v1338
    %1428 = vmatpush.bf16.msra.mxu0 %v1336
    %1429 = vmatpush.bf16.msra.mxu0 %v1334
    %1430 = vmatpush.bf16.msra.mxu0 %v1332
    %1431 = vmatpush.bf16.msra.mxu0 %v1330
    %1432 = vmatpush.bf16.msra.mxu0 %v1328
    %1433 = vmatmul.bf16.gmra.mxu0 %v1417
    %v1434 = vpop.f32.mrf.mxu0
    %v1435 = vadd.f32 0.0, %v1434
    %v1436 = vpop.f32.mrf.mxu0
    %1437 = vdwg.mxu0
    %1438 = vmatpush.bf16.msra.mxu0 %v1343
    %1439 = vmatpush.bf16.msra.mxu0 %v1341
    %1440 = vmatpush.bf16.msra.mxu0 %v1339
    %1441 = vmatpush.bf16.msra.mxu0 %v1337
    %1442 = vmatpush.bf16.msra.mxu0 %v1335
    %1443 = vmatpush.bf16.msra.mxu0 %v1333
    %1444 = vmatpush.bf16.msra.mxu0 %v1331
    %1445 = vmatpush.bf16.msra.mxu0 %v1329
    %1446 = vmatmul.bf16.gmra.mxu0 %v1417
    %v1447 = vpop.f32.mrf.mxu0
    %v1448 = vadd.f32 0.0, %v1447
    %v1449 = vpop.f32.mrf.mxu0
    %1450 = vdwg.mxu0
    %v1467 = vunpack.c.l.b16 %v1004
    %v1468 = vunpack.c.l.b16 %v1005
    %v1469 = vunpack.c.l.b16 %v1006
    %v1470 = vunpack.c.l.b16 %v1007
    %v1471 = vunpack.c.l.b16 %v1008
    %v1472 = vunpack.c.l.b16 %v1009
    %v1473 = vunpack.c.l.b16 %v1010
    %v1474 = vunpack.c.l.b16 %v1011
    %v1475 = vunpack.c.l.b16 %v1012
    %v1476 = vunpack.c.l.b16 %v1013
    %v1477 = vunpack.c.l.b16 %v1014
    %v1478 = vunpack.c.l.b16 %v1015
    %v1479 = vunpack.c.l.b16 %v1016
    %v1480 = vunpack.c.l.b16 %v1017
    %v1481 = vunpack.c.l.b16 %v1018
    %v1482 = vunpack.c.l.b16 %v1019
    %v1483 = vpack.c.b16 %v1468, %v1467
    %v1484 = vpack.c.b16 %v1470, %v1469
    %v1485 = vpack.c.b16 %v1472, %v1471
    %v1486 = vpack.c.b16 %v1474, %v1473
    %v1487 = vpack.c.b16 %v1476, %v1475
    %v1488 = vpack.c.b16 %v1478, %v1477
    %v1489 = vpack.c.b16 %v1480, %v1479
    %v1490 = vpack.c.b16 %v1482, %v1481
    %1499 = vxpose.xlu0.c.b16.start [1/8] %v1483, 128
    %1500 = vxpose.xlu0.c.b16.cont [2/8] %v1484, 128
    %1501 = vxpose.xlu0.c.b16.cont [3/8] %v1485, 128
    %1502 = vxpose.xlu0.c.b16.cont [4/8] %v1486, 128
    %1503 = vxpose.xlu0.c.b16.cont [5/8] %v1487, 128
    %1504 = vxpose.xlu0.c.b16.cont [6/8] %v1488, 128
    %1505 = vxpose.xlu0.c.b16.cont [7/8] %v1489, 128
    %1506 = vxpose.xlu0.c.b16.end [8/8] %v1490, 128
    %v1507 = vpop.trf.xlu0
    %v1508 = vpop.trf.xlu0
    %v1509 = vpop.trf.xlu0
    %v1510 = vpop.trf.xlu0
    %v1511 = vpop.trf.xlu0
    %v1512 = vpop.trf.xlu0
    %v1513 = vpop.trf.xlu0
    %v1514 = vpop.trf.xlu0
    %1515 = vmatpush.bf16.msra.mxu0 %v1002
    %1516 = vmatpush.bf16.msra.mxu0 %v1000
    %1517 = vmatpush.bf16.msra.mxu0 %v998
    %1518 = vmatpush.bf16.msra.mxu0 %v996
    %1519 = vmatpush.bf16.msra.mxu0 %v994
    %1520 = vmatpush.bf16.msra.mxu0 %v992
    %1521 = vmatpush.bf16.msra.mxu0 %v990
    %1522 = vmatpush.bf16.msra.mxu0 %v988
    %1523 = vmatmul.bf16.gmra.mxu0 %v1507
    %v1524 = vpop.f32.mrf.mxu0
    %v1525 = vadd.f32 %v1435, %v1524
    %v1526 = vpop.f32.mrf.mxu0
    %1527 = vdwg.mxu0
    %1528 = vmatpush.bf16.msra.mxu0 %v1003
    %1529 = vmatpush.bf16.msra.mxu0 %v1001
    %1530 = vmatpush.bf16.msra.mxu0 %v999
    %1531 = vmatpush.bf16.msra.mxu0 %v997
    %1532 = vmatpush.bf16.msra.mxu0 %v995
    %1533 = vmatpush.bf16.msra.mxu0 %v993
    %1534 = vmatpush.bf16.msra.mxu0 %v991
    %1535 = vmatpush.bf16.msra.mxu0 %v989
    %1536 = vmatmul.bf16.gmra.mxu0 %v1507
    %v1537 = vpop.f32.mrf.mxu0
    %v1538 = vadd.f32 %v1448, %v1537
    %v1539 = vpop.f32.mrf.mxu0
    %1540 = vdwg.mxu0
    %s1541 = scalar_lea.vmem %s5, 128
    %v1542 = vld [vmem:[%s1541] sm:$0xf]
    %v1543 = vld [vmem:[%s1541 + $0x4] sm:$0xf]
    %v1544 = vld [vmem:[%s1541 + $0x8] sm:$0xf]
    %v1545 = vld [vmem:[%s1541 + $0xc] sm:$0xf]
    %v1546 = vld [vmem:[%s1541 + $0x10] sm:$0xf]
    %v1547 = vld [vmem:[%s1541 + $0x14] sm:$0xf]
    %v1548 = vld [vmem:[%s1541 + $0x18] sm:$0xf]
    %v1549 = vld [vmem:[%s1541 + $0x1c] sm:$0xf]
    %v1550 = vld [vmem:[%s1541 + $0x20] sm:$0xf]
    %v1551 = vld [vmem:[%s1541 + $0x24] sm:$0xf]
    %v1552 = vld [vmem:[%s1541 + $0x28] sm:$0xf]
    %v1553 = vld [vmem:[%s1541 + $0x2c] sm:$0xf]
    %v1554 = vld [vmem:[%s1541 + $0x30] sm:$0xf]
    %v1555 = vld [vmem:[%s1541 + $0x34] sm:$0xf]
    %v1556 = vld [vmem:[%s1541 + $0x38] sm:$0xf]
    %v1557 = vld [vmem:[%s1541 + $0x3c] sm:$0xf]
    %s1558 = scalar_lea.vmem %s6, 256
    %v1559 = vld [vmem:[%s1558] sm:$0xff]
    %v1560 = vld [vmem:[%s1558 + $0x8] sm:$0xff]
    %v1561 = vld [vmem:[%s1558 + $0x10] sm:$0xff]
    %v1562 = vld [vmem:[%s1558 + $0x18] sm:$0xff]
    %v1563 = vld [vmem:[%s1558 + $0x20] sm:$0xff]
    %v1564 = vld [vmem:[%s1558 + $0x28] sm:$0xff]
    %v1565 = vld [vmem:[%s1558 + $0x30] sm:$0xff]
    %v1566 = vld [vmem:[%s1558 + $0x38] sm:$0xff]
    %v1567 = vld [vmem:[%s1558 + $0x40] sm:$0xff]
    %v1568 = vld [vmem:[%s1558 + $0x48] sm:$0xff]
    %v1569 = vld [vmem:[%s1558 + $0x50] sm:$0xff]
    %v1570 = vld [vmem:[%s1558 + $0x58] sm:$0xff]
    %v1571 = vld [vmem:[%s1558 + $0x60] sm:$0xff]
    %v1572 = vld [vmem:[%s1558 + $0x68] sm:$0xff]
    %v1573 = vld [vmem:[%s1558 + $0x70] sm:$0xff]
    %v1574 = vld [vmem:[%s1558 + $0x78] sm:$0xff]
    %1576 = vset.pattern.permute.xlu0 0
    %1577 = vperm.xlu0 %1576, %v1559
    %v1578 = vpop.permute.xlu0 %1577
    %1581 = vset.pattern.permute.xlu0 0
    %1582 = vperm.xlu0 %1581, %v1560
    %v1583 = vpop.permute.xlu0 %1582
    %1586 = vset.pattern.permute.xlu0 0
    %1587 = vperm.xlu0 %1586, %v1561
    %v1588 = vpop.permute.xlu0 %1587
    %1591 = vset.pattern.permute.xlu0 0
    %1592 = vperm.xlu0 %1591, %v1562
    %v1593 = vpop.permute.xlu0 %1592
    %1596 = vset.pattern.permute.xlu0 0
    %1597 = vperm.xlu0 %1596, %v1563
    %v1598 = vpop.permute.xlu0 %1597
    %1601 = vset.pattern.permute.xlu0 0
    %1602 = vperm.xlu0 %1601, %v1564
    %v1603 = vpop.permute.xlu0 %1602
    %1606 = vset.pattern.permute.xlu0 0
    %1607 = vperm.xlu0 %1606, %v1565
    %v1608 = vpop.permute.xlu0 %1607
    %1611 = vset.pattern.permute.xlu0 0
    %1612 = vperm.xlu0 %1611, %v1566
    %v1613 = vpop.permute.xlu0 %1612
    %1616 = vset.pattern.permute.xlu0 0
    %1617 = vperm.xlu0 %1616, %v1567
    %v1618 = vpop.permute.xlu0 %1617
    %1621 = vset.pattern.permute.xlu0 0
    %1622 = vperm.xlu0 %1621, %v1568
    %v1623 = vpop.permute.xlu0 %1622
    %1626 = vset.pattern.permute.xlu0 0
    %1627 = vperm.xlu0 %1626, %v1569
    %v1628 = vpop.permute.xlu0 %1627
    %1631 = vset.pattern.permute.xlu0 0
    %1632 = vperm.xlu0 %1631, %v1570
    %v1633 = vpop.permute.xlu0 %1632
    %1636 = vset.pattern.permute.xlu0 0
    %1637 = vperm.xlu0 %1636, %v1571
    %v1638 = vpop.permute.xlu0 %1637
    %1641 = vset.pattern.permute.xlu0 0
    %1642 = vperm.xlu0 %1641, %v1572
    %v1643 = vpop.permute.xlu0 %1642
    %1646 = vset.pattern.permute.xlu0 0
    %1647 = vperm.xlu0 %1646, %v1573
    %v1648 = vpop.permute.xlu0 %1647
    %1651 = vset.pattern.permute.xlu0 0
    %1652 = vperm.xlu0 %1651, %v1574
    %v1653 = vpop.permute.xlu0 %1652
    %v1671 = vunpack.c.l.b16 %v1542
    %v1672 = vunpack.c.l.b16 %v1543
    %v1673 = vunpack.c.l.b16 %v1544
    %v1674 = vunpack.c.l.b16 %v1545
    %v1675 = vunpack.c.l.b16 %v1546
    %v1676 = vunpack.c.l.b16 %v1547
    %v1677 = vunpack.c.l.b16 %v1548
    %v1678 = vunpack.c.l.b16 %v1549
    %v1679 = vunpack.c.l.b16 %v1550
    %v1680 = vunpack.c.l.b16 %v1551
    %v1681 = vunpack.c.l.b16 %v1552
    %v1682 = vunpack.c.l.b16 %v1553
    %v1683 = vunpack.c.l.b16 %v1554
    %v1684 = vunpack.c.l.b16 %v1555
    %v1685 = vunpack.c.l.b16 %v1556
    %v1686 = vunpack.c.l.b16 %v1557
    %v1687 = vpack.c.b16 %v1672, %v1671
    %v1688 = vpack.c.b16 %v1674, %v1673
    %v1689 = vpack.c.b16 %v1676, %v1675
    %v1690 = vpack.c.b16 %v1678, %v1677
    %v1691 = vpack.c.b16 %v1680, %v1679
    %v1692 = vpack.c.b16 %v1682, %v1681
    %v1693 = vpack.c.b16 %v1684, %v1683
    %v1694 = vpack.c.b16 %v1686, %v1685
    %v1696 = vsel %vm833, %v1687, 0
    %v1699 = vsel %vm833, %v1688, 0
    %v1702 = vsel %vm833, %v1689, 0
    %v1705 = vsel %vm833, %v1690, 0
    %v1708 = vsel %vm833, %v1691, 0
    %v1711 = vsel %vm833, %v1692, 0
    %v1714 = vsel %vm833, %v1693, 0
    %v1717 = vsel %vm833, %v1694, 0
    %1719 = vmatpush.bf16.msra.mxu0 0
    %1720 = vmatpush.bf16.msra.mxu0 0
    %1721 = vmatpush.bf16.msra.mxu0 0
    %1722 = vmatpush.bf16.msra.mxu0 0
    %1723 = vmatpush.bf16.msra.mxu0 %v679
    %1724 = vmatpush.bf16.msra.mxu0 %v677
    %1725 = vmatpush.bf16.msra.mxu0 %v675
    %1726 = vmatpush.bf16.msra.mxu0 %v673
    %1727 = vmatmul.bf16.gmra.mxu0 %v1696
    %v1728 = vpop.f32.mrf.mxu0
    %v1729 = vadd.f32 %v1578, %v1728
    %v1730 = vpop.f32.mrf.mxu0
    %v1731 = vadd.f32 %v1583, %v1730
    %1732 = vmatmul.bf16.gmra.mxu0 %v1699
    %v1733 = vpop.f32.mrf.mxu0
    %v1734 = vadd.f32 %v1588, %v1733
    %v1735 = vpop.f32.mrf.mxu0
    %v1736 = vadd.f32 %v1593, %v1735
    %1737 = vmatmul.bf16.gmra.mxu0 %v1702
    %v1738 = vpop.f32.mrf.mxu0
    %v1739 = vadd.f32 %v1598, %v1738
    %v1740 = vpop.f32.mrf.mxu0
    %v1741 = vadd.f32 %v1603, %v1740
    %1742 = vmatmul.bf16.gmra.mxu0 %v1705
    %v1743 = vpop.f32.mrf.mxu0
    %v1744 = vadd.f32 %v1608, %v1743
    %v1745 = vpop.f32.mrf.mxu0
    %v1746 = vadd.f32 %v1613, %v1745
    %1747 = vmatmul.bf16.gmra.mxu0 %v1708
    %v1748 = vpop.f32.mrf.mxu0
    %v1749 = vadd.f32 %v1618, %v1748
    %v1750 = vpop.f32.mrf.mxu0
    %v1751 = vadd.f32 %v1623, %v1750
    %1752 = vmatmul.bf16.gmra.mxu0 %v1711
    %v1753 = vpop.f32.mrf.mxu0
    %v1754 = vadd.f32 %v1628, %v1753
    %v1755 = vpop.f32.mrf.mxu0
    %v1756 = vadd.f32 %v1633, %v1755
    %1757 = vmatmul.bf16.gmra.mxu0 %v1714
    %v1758 = vpop.f32.mrf.mxu0
    %v1759 = vadd.f32 %v1638, %v1758
    %v1760 = vpop.f32.mrf.mxu0
    %v1761 = vadd.f32 %v1643, %v1760
    %1762 = vmatmul.bf16.gmra.mxu0 %v1717
    %v1763 = vpop.f32.mrf.mxu0
    %v1764 = vadd.f32 %v1648, %v1763
    %v1765 = vpop.f32.mrf.mxu0
    %v1766 = vadd.f32 %v1653, %v1765
    %1767 = vdwg.mxu0
    %1768 = vmatpush.bf16.msra.mxu0 0
    %1769 = vmatpush.bf16.msra.mxu0 0
    %1770 = vmatpush.bf16.msra.mxu0 0
    %1771 = vmatpush.bf16.msra.mxu0 0
    %1772 = vmatpush.bf16.msra.mxu0 %v680
    %1773 = vmatpush.bf16.msra.mxu0 %v678
    %1774 = vmatpush.bf16.msra.mxu0 %v676
    %1775 = vmatpush.bf16.msra.mxu0 %v674
    %1776 = vmatmul.bf16.gmra.mxu0 %v1696
    %v1777 = vpop.f32.mrf.mxu0
    %v1778 = vadd.f32 %v1578, %v1777
    %v1779 = vpop.f32.mrf.mxu0
    %v1780 = vadd.f32 %v1583, %v1779
    %1781 = vmatmul.bf16.gmra.mxu0 %v1699
    %v1782 = vpop.f32.mrf.mxu0
    %v1783 = vadd.f32 %v1588, %v1782
    %v1784 = vpop.f32.mrf.mxu0
    %v1785 = vadd.f32 %v1593, %v1784
    %1786 = vmatmul.bf16.gmra.mxu0 %v1702
    %v1787 = vpop.f32.mrf.mxu0
    %v1788 = vadd.f32 %v1598, %v1787
    %v1789 = vpop.f32.mrf.mxu0
    %v1790 = vadd.f32 %v1603, %v1789
    %1791 = vmatmul.bf16.gmra.mxu0 %v1705
    %v1792 = vpop.f32.mrf.mxu0
    %v1793 = vadd.f32 %v1608, %v1792
    %v1794 = vpop.f32.mrf.mxu0
    %v1795 = vadd.f32 %v1613, %v1794
    %1796 = vmatmul.bf16.gmra.mxu0 %v1708
    %v1797 = vpop.f32.mrf.mxu0
    %v1798 = vadd.f32 %v1618, %v1797
    %v1799 = vpop.f32.mrf.mxu0
    %v1800 = vadd.f32 %v1623, %v1799
    %1801 = vmatmul.bf16.gmra.mxu0 %v1711
    %v1802 = vpop.f32.mrf.mxu0
    %v1803 = vadd.f32 %v1628, %v1802
    %v1804 = vpop.f32.mrf.mxu0
    %v1805 = vadd.f32 %v1633, %v1804
    %1806 = vmatmul.bf16.gmra.mxu0 %v1714
    %v1807 = vpop.f32.mrf.mxu0
    %v1808 = vadd.f32 %v1638, %v1807
    %v1809 = vpop.f32.mrf.mxu0
    %v1810 = vadd.f32 %v1643, %v1809
    %1811 = vmatmul.bf16.gmra.mxu0 %v1717
    %v1812 = vpop.f32.mrf.mxu0
    %v1813 = vadd.f32 %v1648, %v1812
    %v1814 = vpop.f32.mrf.mxu0
    %v1815 = vadd.f32 %v1653, %v1814
    %1816 = vdwg.mxu0
    %v1817 = vmax.f32 %v1729, 0.0
    %v1818 = vmax.f32 %v1778, 0.0
    %v1819 = vmax.f32 %v1731, 0.0
    %v1820 = vmax.f32 %v1780, 0.0
    %v1821 = vmax.f32 %v1734, 0.0
    %v1822 = vmax.f32 %v1783, 0.0
    %v1823 = vmax.f32 %v1736, 0.0
    %v1824 = vmax.f32 %v1785, 0.0
    %v1825 = vmax.f32 %v1739, 0.0
    %v1826 = vmax.f32 %v1788, 0.0
    %v1827 = vmax.f32 %v1741, 0.0
    %v1828 = vmax.f32 %v1790, 0.0
    %v1829 = vmax.f32 %v1744, 0.0
    %v1830 = vmax.f32 %v1793, 0.0
    %v1831 = vmax.f32 %v1746, 0.0
    %v1832 = vmax.f32 %v1795, 0.0
    %v1833 = vmax.f32 %v1749, 0.0
    %v1834 = vmax.f32 %v1798, 0.0
    %v1835 = vmax.f32 %v1751, 0.0
    %v1836 = vmax.f32 %v1800, 0.0
    %v1837 = vmax.f32 %v1754, 0.0
    %v1838 = vmax.f32 %v1803, 0.0
    %v1839 = vmax.f32 %v1756, 0.0
    %v1840 = vmax.f32 %v1805, 0.0
    %v1841 = vmax.f32 %v1759, 0.0
    %v1842 = vmax.f32 %v1808, 0.0
    %v1843 = vmax.f32 %v1761, 0.0
    %v1844 = vmax.f32 %v1810, 0.0
    %v1845 = vmax.f32 %v1764, 0.0
    %v1846 = vmax.f32 %v1813, 0.0
    %v1847 = vmax.f32 %v1766, 0.0
    %v1848 = vmax.f32 %v1815, 0.0
    %v1849 = vpack.c.bf16 %v1819, %v1817
    %v1850 = vpack.c.bf16 %v1820, %v1818
    %v1851 = vpack.c.bf16 %v1823, %v1821
    %v1852 = vpack.c.bf16 %v1824, %v1822
    %v1853 = vpack.c.bf16 %v1827, %v1825
    %v1854 = vpack.c.bf16 %v1828, %v1826
    %v1855 = vpack.c.bf16 %v1831, %v1829
    %v1856 = vpack.c.bf16 %v1832, %v1830
    %v1857 = vpack.c.bf16 %v1835, %v1833
    %v1858 = vpack.c.bf16 %v1836, %v1834
    %v1859 = vpack.c.bf16 %v1839, %v1837
    %v1860 = vpack.c.bf16 %v1840, %v1838
    %v1861 = vpack.c.bf16 %v1843, %v1841
    %v1862 = vpack.c.bf16 %v1844, %v1842
    %v1863 = vpack.c.bf16 %v1847, %v1845
    %v1864 = vpack.c.bf16 %v1848, %v1846
    %s1865 = scalar_lea.vmem %s7, 128
    %v1866 = vld [vmem:[%s1865] sm:$0xf]
    %v1867 = vld [vmem:[%s1865 + $0x4] sm:$0xf]
    %v1868 = vld [vmem:[%s1865 + $0x8] sm:$0xf]
    %v1869 = vld [vmem:[%s1865 + $0xc] sm:$0xf]
    %v1870 = vld [vmem:[%s1865 + $0x10] sm:$0xf]
    %v1871 = vld [vmem:[%s1865 + $0x14] sm:$0xf]
    %v1872 = vld [vmem:[%s1865 + $0x18] sm:$0xf]
    %v1873 = vld [vmem:[%s1865 + $0x1c] sm:$0xf]
    %v1874 = vld [vmem:[%s1865 + $0x20] sm:$0xf]
    %v1875 = vld [vmem:[%s1865 + $0x24] sm:$0xf]
    %v1876 = vld [vmem:[%s1865 + $0x28] sm:$0xf]
    %v1877 = vld [vmem:[%s1865 + $0x2c] sm:$0xf]
    %v1878 = vld [vmem:[%s1865 + $0x30] sm:$0xf]
    %v1879 = vld [vmem:[%s1865 + $0x34] sm:$0xf]
    %v1880 = vld [vmem:[%s1865 + $0x38] sm:$0xf]
    %v1881 = vld [vmem:[%s1865 + $0x3c] sm:$0xf]
    %v1898 = vunpack.c.l.b16 %v1866
    %v1899 = vunpack.c.l.b16 %v1867
    %v1900 = vunpack.c.l.b16 %v1868
    %v1901 = vunpack.c.l.b16 %v1869
    %v1902 = vunpack.c.l.b16 %v1870
    %v1903 = vunpack.c.l.b16 %v1871
    %v1904 = vunpack.c.l.b16 %v1872
    %v1905 = vunpack.c.l.b16 %v1873
    %v1906 = vunpack.c.l.b16 %v1874
    %v1907 = vunpack.c.l.b16 %v1875
    %v1908 = vunpack.c.l.b16 %v1876
    %v1909 = vunpack.c.l.b16 %v1877
    %v1910 = vunpack.c.l.b16 %v1878
    %v1911 = vunpack.c.l.b16 %v1879
    %v1912 = vunpack.c.l.b16 %v1880
    %v1913 = vunpack.c.l.b16 %v1881
    %v1914 = vpack.c.b16 %v1899, %v1898
    %v1915 = vpack.c.b16 %v1901, %v1900
    %v1916 = vpack.c.b16 %v1903, %v1902
    %v1917 = vpack.c.b16 %v1905, %v1904
    %v1918 = vpack.c.b16 %v1907, %v1906
    %v1919 = vpack.c.b16 %v1909, %v1908
    %v1920 = vpack.c.b16 %v1911, %v1910
    %v1921 = vpack.c.b16 %v1913, %v1912
    %1930 = vxpose.xlu0.c.b16.start [1/8] %v1914, 128
    %1931 = vxpose.xlu0.c.b16.cont [2/8] %v1915, 128
    %1932 = vxpose.xlu0.c.b16.cont [3/8] %v1916, 128
    %1933 = vxpose.xlu0.c.b16.cont [4/8] %v1917, 128
    %1934 = vxpose.xlu0.c.b16.cont [5/8] %v1918, 128
    %1935 = vxpose.xlu0.c.b16.cont [6/8] %v1919, 128
    %1936 = vxpose.xlu0.c.b16.cont [7/8] %v1920, 128
    %1937 = vxpose.xlu0.c.b16.end [8/8] %v1921, 128
    %v1938 = vpop.trf.xlu0
    %v1939 = vpop.trf.xlu0
    %v1940 = vpop.trf.xlu0
    %v1941 = vpop.trf.xlu0
    %v1942 = vpop.trf.xlu0
    %v1943 = vpop.trf.xlu0
    %v1944 = vpop.trf.xlu0
    %v1945 = vpop.trf.xlu0
    %1946 = vmatpush.bf16.msra.mxu0 %v1863
    %1947 = vmatpush.bf16.msra.mxu0 %v1861
    %1948 = vmatpush.bf16.msra.mxu0 %v1859
    %1949 = vmatpush.bf16.msra.mxu0 %v1857
    %1950 = vmatpush.bf16.msra.mxu0 %v1855
    %1951 = vmatpush.bf16.msra.mxu0 %v1853
    %1952 = vmatpush.bf16.msra.mxu0 %v1851
    %1953 = vmatpush.bf16.msra.mxu0 %v1849
    %1954 = vmatmul.bf16.gmra.mxu0 %v1938
    %v1955 = vpop.f32.mrf.mxu0
    %v1956 = vadd.f32 0.0, %v1955
    %v1957 = vpop.f32.mrf.mxu0
    %1958 = vdwg.mxu0
    %1959 = vmatpush.bf16.msra.mxu0 %v1864
    %1960 = vmatpush.bf16.msra.mxu0 %v1862
    %1961 = vmatpush.bf16.msra.mxu0 %v1860
    %1962 = vmatpush.bf16.msra.mxu0 %v1858
    %1963 = vmatpush.bf16.msra.mxu0 %v1856
    %1964 = vmatpush.bf16.msra.mxu0 %v1854
    %1965 = vmatpush.bf16.msra.mxu0 %v1852
    %1966 = vmatpush.bf16.msra.mxu0 %v1850
    %1967 = vmatmul.bf16.gmra.mxu0 %v1938
    %v1968 = vpop.f32.mrf.mxu0
    %v1969 = vadd.f32 0.0, %v1968
    %v1970 = vpop.f32.mrf.mxu0
    %1971 = vdwg.mxu0
    %v1972 = vadd.f32 %v1525, %v1956
    %v1973 = vadd.f32 %v1538, %v1969
    %s1974 = scalar_lea.vmem %s5, 192
    %v1975 = vld [vmem:[%s1974] sm:$0xf]
    %v1976 = vld [vmem:[%s1974 + $0x4] sm:$0xf]
    %v1977 = vld [vmem:[%s1974 + $0x8] sm:$0xf]
    %v1978 = vld [vmem:[%s1974 + $0xc] sm:$0xf]
    %v1979 = vld [vmem:[%s1974 + $0x10] sm:$0xf]
    %v1980 = vld [vmem:[%s1974 + $0x14] sm:$0xf]
    %v1981 = vld [vmem:[%s1974 + $0x18] sm:$0xf]
    %v1982 = vld [vmem:[%s1974 + $0x1c] sm:$0xf]
    %v1983 = vld [vmem:[%s1974 + $0x20] sm:$0xf]
    %v1984 = vld [vmem:[%s1974 + $0x24] sm:$0xf]
    %v1985 = vld [vmem:[%s1974 + $0x28] sm:$0xf]
    %v1986 = vld [vmem:[%s1974 + $0x2c] sm:$0xf]
    %v1987 = vld [vmem:[%s1974 + $0x30] sm:$0xf]
    %v1988 = vld [vmem:[%s1974 + $0x34] sm:$0xf]
    %v1989 = vld [vmem:[%s1974 + $0x38] sm:$0xf]
    %v1990 = vld [vmem:[%s1974 + $0x3c] sm:$0xf]
    %s1991 = scalar_lea.vmem %s6, 384
    %v1992 = vld [vmem:[%s1991] sm:$0xff]
    %v1993 = vld [vmem:[%s1991 + $0x8] sm:$0xff]
    %v1994 = vld [vmem:[%s1991 + $0x10] sm:$0xff]
    %v1995 = vld [vmem:[%s1991 + $0x18] sm:$0xff]
    %v1996 = vld [vmem:[%s1991 + $0x20] sm:$0xff]
    %v1997 = vld [vmem:[%s1991 + $0x28] sm:$0xff]
    %v1998 = vld [vmem:[%s1991 + $0x30] sm:$0xff]
    %v1999 = vld [vmem:[%s1991 + $0x38] sm:$0xff]
    %v2000 = vld [vmem:[%s1991 + $0x40] sm:$0xff]
    %v2001 = vld [vmem:[%s1991 + $0x48] sm:$0xff]
    %v2002 = vld [vmem:[%s1991 + $0x50] sm:$0xff]
    %v2003 = vld [vmem:[%s1991 + $0x58] sm:$0xff]
    %v2004 = vld [vmem:[%s1991 + $0x60] sm:$0xff]
    %v2005 = vld [vmem:[%s1991 + $0x68] sm:$0xff]
    %v2006 = vld [vmem:[%s1991 + $0x70] sm:$0xff]
    %v2007 = vld [vmem:[%s1991 + $0x78] sm:$0xff]
    %2009 = vset.pattern.permute.xlu0 0
    %2010 = vperm.xlu0 %2009, %v1992
    %v2011 = vpop.permute.xlu0 %2010
    %2014 = vset.pattern.permute.xlu0 0
    %2015 = vperm.xlu0 %2014, %v1993
    %v2016 = vpop.permute.xlu0 %2015
    %2019 = vset.pattern.permute.xlu0 0
    %2020 = vperm.xlu0 %2019, %v1994
    %v2021 = vpop.permute.xlu0 %2020
    %2024 = vset.pattern.permute.xlu0 0
    %2025 = vperm.xlu0 %2024, %v1995
    %v2026 = vpop.permute.xlu0 %2025
    %2029 = vset.pattern.permute.xlu0 0
    %2030 = vperm.xlu0 %2029, %v1996
    %v2031 = vpop.permute.xlu0 %2030
    %2034 = vset.pattern.permute.xlu0 0
    %2035 = vperm.xlu0 %2034, %v1997
    %v2036 = vpop.permute.xlu0 %2035
    %2039 = vset.pattern.permute.xlu0 0
    %2040 = vperm.xlu0 %2039, %v1998
    %v2041 = vpop.permute.xlu0 %2040
    %2044 = vset.pattern.permute.xlu0 0
    %2045 = vperm.xlu0 %2044, %v1999
    %v2046 = vpop.permute.xlu0 %2045
    %2049 = vset.pattern.permute.xlu0 0
    %2050 = vperm.xlu0 %2049, %v2000
    %v2051 = vpop.permute.xlu0 %2050
    %2054 = vset.pattern.permute.xlu0 0
    %2055 = vperm.xlu0 %2054, %v2001
    %v2056 = vpop.permute.xlu0 %2055
    %2059 = vset.pattern.permute.xlu0 0
    %2060 = vperm.xlu0 %2059, %v2002
    %v2061 = vpop.permute.xlu0 %2060
    %2064 = vset.pattern.permute.xlu0 0
    %2065 = vperm.xlu0 %2064, %v2003
    %v2066 = vpop.permute.xlu0 %2065
    %2069 = vset.pattern.permute.xlu0 0
    %2070 = vperm.xlu0 %2069, %v2004
    %v2071 = vpop.permute.xlu0 %2070
    %2074 = vset.pattern.permute.xlu0 0
    %2075 = vperm.xlu0 %2074, %v2005
    %v2076 = vpop.permute.xlu0 %2075
    %2079 = vset.pattern.permute.xlu0 0
    %2080 = vperm.xlu0 %2079, %v2006
    %v2081 = vpop.permute.xlu0 %2080
    %2084 = vset.pattern.permute.xlu0 0
    %2085 = vperm.xlu0 %2084, %v2007
    %v2086 = vpop.permute.xlu0 %2085
    %v2104 = vunpack.c.l.b16 %v1975
    %v2105 = vunpack.c.l.b16 %v1976
    %v2106 = vunpack.c.l.b16 %v1977
    %v2107 = vunpack.c.l.b16 %v1978
    %v2108 = vunpack.c.l.b16 %v1979
    %v2109 = vunpack.c.l.b16 %v1980
    %v2110 = vunpack.c.l.b16 %v1981
    %v2111 = vunpack.c.l.b16 %v1982
    %v2112 = vunpack.c.l.b16 %v1983
    %v2113 = vunpack.c.l.b16 %v1984
    %v2114 = vunpack.c.l.b16 %v1985
    %v2115 = vunpack.c.l.b16 %v1986
    %v2116 = vunpack.c.l.b16 %v1987
    %v2117 = vunpack.c.l.b16 %v1988
    %v2118 = vunpack.c.l.b16 %v1989
    %v2119 = vunpack.c.l.b16 %v1990
    %v2120 = vpack.c.b16 %v2105, %v2104
    %v2121 = vpack.c.b16 %v2107, %v2106
    %v2122 = vpack.c.b16 %v2109, %v2108
    %v2123 = vpack.c.b16 %v2111, %v2110
    %v2124 = vpack.c.b16 %v2113, %v2112
    %v2125 = vpack.c.b16 %v2115, %v2114
    %v2126 = vpack.c.b16 %v2117, %v2116
    %v2127 = vpack.c.b16 %v2119, %v2118
    %v2129 = vsel %vm833, %v2120, 0
    %v2132 = vsel %vm833, %v2121, 0
    %v2135 = vsel %vm833, %v2122, 0
    %v2138 = vsel %vm833, %v2123, 0
    %v2141 = vsel %vm833, %v2124, 0
    %v2144 = vsel %vm833, %v2125, 0
    %v2147 = vsel %vm833, %v2126, 0
    %v2150 = vsel %vm833, %v2127, 0
    %2152 = vmatpush.bf16.msra.mxu0 0
    %2153 = vmatpush.bf16.msra.mxu0 0
    %2154 = vmatpush.bf16.msra.mxu0 0
    %2155 = vmatpush.bf16.msra.mxu0 0
    %2156 = vmatpush.bf16.msra.mxu0 %v679
    %2157 = vmatpush.bf16.msra.mxu0 %v677
    %2158 = vmatpush.bf16.msra.mxu0 %v675
    %2159 = vmatpush.bf16.msra.mxu0 %v673
    %2160 = vmatmul.bf16.gmra.mxu0 %v2129
    %v2161 = vpop.f32.mrf.mxu0
    %v2162 = vadd.f32 %v2011, %v2161
    %v2163 = vpop.f32.mrf.mxu0
    %v2164 = vadd.f32 %v2016, %v2163
    %2165 = vmatmul.bf16.gmra.mxu0 %v2132
    %v2166 = vpop.f32.mrf.mxu0
    %v2167 = vadd.f32 %v2021, %v2166
    %v2168 = vpop.f32.mrf.mxu0
    %v2169 = vadd.f32 %v2026, %v2168
    %2170 = vmatmul.bf16.gmra.mxu0 %v2135
    %v2171 = vpop.f32.mrf.mxu0
    %v2172 = vadd.f32 %v2031, %v2171
    %v2173 = vpop.f32.mrf.mxu0
    %v2174 = vadd.f32 %v2036, %v2173
    %2175 = vmatmul.bf16.gmra.mxu0 %v2138
    %v2176 = vpop.f32.mrf.mxu0
    %v2177 = vadd.f32 %v2041, %v2176
    %v2178 = vpop.f32.mrf.mxu0
    %v2179 = vadd.f32 %v2046, %v2178
    %2180 = vmatmul.bf16.gmra.mxu0 %v2141
    %v2181 = vpop.f32.mrf.mxu0
    %v2182 = vadd.f32 %v2051, %v2181
    %v2183 = vpop.f32.mrf.mxu0
    %v2184 = vadd.f32 %v2056, %v2183
    %2185 = vmatmul.bf16.gmra.mxu0 %v2144
    %v2186 = vpop.f32.mrf.mxu0
    %v2187 = vadd.f32 %v2061, %v2186
    %v2188 = vpop.f32.mrf.mxu0
    %v2189 = vadd.f32 %v2066, %v2188
    %2190 = vmatmul.bf16.gmra.mxu0 %v2147
    %v2191 = vpop.f32.mrf.mxu0
    %v2192 = vadd.f32 %v2071, %v2191
    %v2193 = vpop.f32.mrf.mxu0
    %v2194 = vadd.f32 %v2076, %v2193
    %2195 = vmatmul.bf16.gmra.mxu0 %v2150
    %v2196 = vpop.f32.mrf.mxu0
    %v2197 = vadd.f32 %v2081, %v2196
    %v2198 = vpop.f32.mrf.mxu0
    %v2199 = vadd.f32 %v2086, %v2198
    %2200 = vdwg.mxu0
    %2201 = vmatpush.bf16.msra.mxu0 0
    %2202 = vmatpush.bf16.msra.mxu0 0
    %2203 = vmatpush.bf16.msra.mxu0 0
    %2204 = vmatpush.bf16.msra.mxu0 0
    %2205 = vmatpush.bf16.msra.mxu0 %v680
    %2206 = vmatpush.bf16.msra.mxu0 %v678
    %2207 = vmatpush.bf16.msra.mxu0 %v676
    %2208 = vmatpush.bf16.msra.mxu0 %v674
    %2209 = vmatmul.bf16.gmra.mxu0 %v2129
    %v2210 = vpop.f32.mrf.mxu0
    %v2211 = vadd.f32 %v2011, %v2210
    %v2212 = vpop.f32.mrf.mxu0
    %v2213 = vadd.f32 %v2016, %v2212
    %2214 = vmatmul.bf16.gmra.mxu0 %v2132
    %v2215 = vpop.f32.mrf.mxu0
    %v2216 = vadd.f32 %v2021, %v2215
    %v2217 = vpop.f32.mrf.mxu0
    %v2218 = vadd.f32 %v2026, %v2217
    %2219 = vmatmul.bf16.gmra.mxu0 %v2135
    %v2220 = vpop.f32.mrf.mxu0
    %v2221 = vadd.f32 %v2031, %v2220
    %v2222 = vpop.f32.mrf.mxu0
    %v2223 = vadd.f32 %v2036, %v2222
    %2224 = vmatmul.bf16.gmra.mxu0 %v2138
    %v2225 = vpop.f32.mrf.mxu0
    %v2226 = vadd.f32 %v2041, %v2225
    %v2227 = vpop.f32.mrf.mxu0
    %v2228 = vadd.f32 %v2046, %v2227
    %2229 = vmatmul.bf16.gmra.mxu0 %v2141
    %v2230 = vpop.f32.mrf.mxu0
    %v2231 = vadd.f32 %v2051, %v2230
    %v2232 = vpop.f32.mrf.mxu0
    %v2233 = vadd.f32 %v2056, %v2232
    %2234 = vmatmul.bf16.gmra.mxu0 %v2144
    %v2235 = vpop.f32.mrf.mxu0
    %v2236 = vadd.f32 %v2061, %v2235
    %v2237 = vpop.f32.mrf.mxu0
    %v2238 = vadd.f32 %v2066, %v2237
    %2239 = vmatmul.bf16.gmra.mxu0 %v2147
    %v2240 = vpop.f32.mrf.mxu0
    %v2241 = vadd.f32 %v2071, %v2240
    %v2242 = vpop.f32.mrf.mxu0
    %v2243 = vadd.f32 %v2076, %v2242
    %2244 = vmatmul.bf16.gmra.mxu0 %v2150
    %v2245 = vpop.f32.mrf.mxu0
    %v2246 = vadd.f32 %v2081, %v2245
    %v2247 = vpop.f32.mrf.mxu0
    %v2248 = vadd.f32 %v2086, %v2247
    %2249 = vdwg.mxu0
    %v2250 = vmax.f32 %v2162, 0.0
    %v2251 = vmax.f32 %v2211, 0.0
    %v2252 = vmax.f32 %v2164, 0.0
    %v2253 = vmax.f32 %v2213, 0.0
    %v2254 = vmax.f32 %v2167, 0.0
    %v2255 = vmax.f32 %v2216, 0.0
    %v2256 = vmax.f32 %v2169, 0.0
    %v2257 = vmax.f32 %v2218, 0.0
    %v2258 = vmax.f32 %v2172, 0.0
    %v2259 = vmax.f32 %v2221, 0.0
    %v2260 = vmax.f32 %v2174, 0.0
    %v2261 = vmax.f32 %v2223, 0.0
    %v2262 = vmax.f32 %v2177, 0.0
    %v2263 = vmax.f32 %v2226, 0.0
    %v2264 = vmax.f32 %v2179, 0.0
    %v2265 = vmax.f32 %v2228, 0.0
    %v2266 = vmax.f32 %v2182, 0.0
    %v2267 = vmax.f32 %v2231, 0.0
    %v2268 = vmax.f32 %v2184, 0.0
    %v2269 = vmax.f32 %v2233, 0.0
    %v2270 = vmax.f32 %v2187, 0.0
    %v2271 = vmax.f32 %v2236, 0.0
    %v2272 = vmax.f32 %v2189, 0.0
    %v2273 = vmax.f32 %v2238, 0.0
    %v2274 = vmax.f32 %v2192, 0.0
    %v2275 = vmax.f32 %v2241, 0.0
    %v2276 = vmax.f32 %v2194, 0.0
    %v2277 = vmax.f32 %v2243, 0.0
    %v2278 = vmax.f32 %v2197, 0.0
    %v2279 = vmax.f32 %v2246, 0.0
    %v2280 = vmax.f32 %v2199, 0.0
    %v2281 = vmax.f32 %v2248, 0.0
    %v2282 = vpack.c.bf16 %v2252, %v2250
    %v2283 = vpack.c.bf16 %v2253, %v2251
    %v2284 = vpack.c.bf16 %v2256, %v2254
    %v2285 = vpack.c.bf16 %v2257, %v2255
    %v2286 = vpack.c.bf16 %v2260, %v2258
    %v2287 = vpack.c.bf16 %v2261, %v2259
    %v2288 = vpack.c.bf16 %v2264, %v2262
    %v2289 = vpack.c.bf16 %v2265, %v2263
    %v2290 = vpack.c.bf16 %v2268, %v2266
    %v2291 = vpack.c.bf16 %v2269, %v2267
    %v2292 = vpack.c.bf16 %v2272, %v2270
    %v2293 = vpack.c.bf16 %v2273, %v2271
    %v2294 = vpack.c.bf16 %v2276, %v2274
    %v2295 = vpack.c.bf16 %v2277, %v2275
    %v2296 = vpack.c.bf16 %v2280, %v2278
    %v2297 = vpack.c.bf16 %v2281, %v2279
    %s2298 = scalar_lea.vmem %s7, 192
    %v2299 = vld [vmem:[%s2298] sm:$0xf]
    %v2300 = vld [vmem:[%s2298 + $0x4] sm:$0xf]
    %v2301 = vld [vmem:[%s2298 + $0x8] sm:$0xf]
    %v2302 = vld [vmem:[%s2298 + $0xc] sm:$0xf]
    %v2303 = vld [vmem:[%s2298 + $0x10] sm:$0xf]
    %v2304 = vld [vmem:[%s2298 + $0x14] sm:$0xf]
    %v2305 = vld [vmem:[%s2298 + $0x18] sm:$0xf]
    %v2306 = vld [vmem:[%s2298 + $0x1c] sm:$0xf]
    %v2307 = vld [vmem:[%s2298 + $0x20] sm:$0xf]
    %v2308 = vld [vmem:[%s2298 + $0x24] sm:$0xf]
    %v2309 = vld [vmem:[%s2298 + $0x28] sm:$0xf]
    %v2310 = vld [vmem:[%s2298 + $0x2c] sm:$0xf]
    %v2311 = vld [vmem:[%s2298 + $0x30] sm:$0xf]
    %v2312 = vld [vmem:[%s2298 + $0x34] sm:$0xf]
    %v2313 = vld [vmem:[%s2298 + $0x38] sm:$0xf]
    %v2314 = vld [vmem:[%s2298 + $0x3c] sm:$0xf]
    %v2331 = vunpack.c.l.b16 %v2299
    %v2332 = vunpack.c.l.b16 %v2300
    %v2333 = vunpack.c.l.b16 %v2301
    %v2334 = vunpack.c.l.b16 %v2302
    %v2335 = vunpack.c.l.b16 %v2303
    %v2336 = vunpack.c.l.b16 %v2304
    %v2337 = vunpack.c.l.b16 %v2305
    %v2338 = vunpack.c.l.b16 %v2306
    %v2339 = vunpack.c.l.b16 %v2307
    %v2340 = vunpack.c.l.b16 %v2308
    %v2341 = vunpack.c.l.b16 %v2309
    %v2342 = vunpack.c.l.b16 %v2310
    %v2343 = vunpack.c.l.b16 %v2311
    %v2344 = vunpack.c.l.b16 %v2312
    %v2345 = vunpack.c.l.b16 %v2313
    %v2346 = vunpack.c.l.b16 %v2314
    %v2347 = vpack.c.b16 %v2332, %v2331
    %v2348 = vpack.c.b16 %v2334, %v2333
    %v2349 = vpack.c.b16 %v2336, %v2335
    %v2350 = vpack.c.b16 %v2338, %v2337
    %v2351 = vpack.c.b16 %v2340, %v2339
    %v2352 = vpack.c.b16 %v2342, %v2341
    %v2353 = vpack.c.b16 %v2344, %v2343
    %v2354 = vpack.c.b16 %v2346, %v2345
    %2363 = vxpose.xlu0.c.b16.start [1/8] %v2347, 128
    %2364 = vxpose.xlu0.c.b16.cont [2/8] %v2348, 128
    %2365 = vxpose.xlu0.c.b16.cont [3/8] %v2349, 128
    %2366 = vxpose.xlu0.c.b16.cont [4/8] %v2350, 128
    %2367 = vxpose.xlu0.c.b16.cont [5/8] %v2351, 128
    %2368 = vxpose.xlu0.c.b16.cont [6/8] %v2352, 128
    %2369 = vxpose.xlu0.c.b16.cont [7/8] %v2353, 128
    %2370 = vxpose.xlu0.c.b16.end [8/8] %v2354, 128
    %v2371 = vpop.trf.xlu0
    %v2372 = vpop.trf.xlu0
    %v2373 = vpop.trf.xlu0
    %v2374 = vpop.trf.xlu0
    %v2375 = vpop.trf.xlu0
    %v2376 = vpop.trf.xlu0
    %v2377 = vpop.trf.xlu0
    %v2378 = vpop.trf.xlu0
    %2379 = vmatpush.bf16.msra.mxu0 %v2296
    %2380 = vmatpush.bf16.msra.mxu0 %v2294
    %2381 = vmatpush.bf16.msra.mxu0 %v2292
    %2382 = vmatpush.bf16.msra.mxu0 %v2290
    %2383 = vmatpush.bf16.msra.mxu0 %v2288
    %2384 = vmatpush.bf16.msra.mxu0 %v2286
    %2385 = vmatpush.bf16.msra.mxu0 %v2284
    %2386 = vmatpush.bf16.msra.mxu0 %v2282
    %2387 = vmatmul.bf16.gmra.mxu0 %v2371
    %v2388 = vpop.f32.mrf.mxu0
    %v2389 = vadd.f32 0.0, %v2388
    %v2390 = vpop.f32.mrf.mxu0
    %2391 = vdwg.mxu0
    %2392 = vmatpush.bf16.msra.mxu0 %v2297
    %2393 = vmatpush.bf16.msra.mxu0 %v2295
    %2394 = vmatpush.bf16.msra.mxu0 %v2293
    %2395 = vmatpush.bf16.msra.mxu0 %v2291
    %2396 = vmatpush.bf16.msra.mxu0 %v2289
    %2397 = vmatpush.bf16.msra.mxu0 %v2287
    %2398 = vmatpush.bf16.msra.mxu0 %v2285
    %2399 = vmatpush.bf16.msra.mxu0 %v2283
    %2400 = vmatmul.bf16.gmra.mxu0 %v2371
    %v2401 = vpop.f32.mrf.mxu0
    %v2402 = vadd.f32 0.0, %v2401
    %v2403 = vpop.f32.mrf.mxu0
    %2404 = vdwg.mxu0
    %v2405 = vadd.f32 %v1972, %v2389
    %v2406 = vadd.f32 %v1973, %v2402
    %v2407 = vld [vmem:[#allocation2] sm:$0x1]
    %2409 = vset.pattern.permute.xlu0 0
    %2410 = vperm.xlu0 %2409, %v2407
    %v2411 = vpop.permute.xlu0 %2410
    %v2413 = vperm.slane %v2411, 0
    %v2414 = vadd.f32 %v2405, %v2413
    %v2415 = vadd.f32 %v2406, %v2413
    %v2418 = vrot.slane %v2415, 7
    %vm2419 = vcmask 1040384
    %v2420 = vsel %vm2419, %v2414, %v2418
    %v2422 = vlaneseq
    %vm2423 = vcmp.ge.s32.totalorder %v2422, 0
    %vm2424 = vcmp.lt.s32.totalorder %v2422, 256
    %vm2425 = vmand %vm2423, %vm2424
    %2426 = vst.msk [vmem:[#allocation3] sm:$0x3] %vm2425, %v2420
    // Predicated region
    $region38: #{tpu_custom_call.1} parent=1 // pred_check
      _
    $region39: #{tpu_custom_call.1} parent=1 // pred_check_branch
      %2428 = sbr.rel (0) target = $region41
    $region40: #{tpu_custom_call.1} parent=1 // pred_region
      %2430 = vsyncadd [#allocation4], 0
      %s2432 = sshll.u32 [#allocation3], 4
      %s2433 = int_to_ptr.vmem [resolvable:$true] %s2432
      %s2434 = sshll.u32 %s9, 4
      %s2435 = int_to_ptr.hbm [resolvable:$true] %s2434
      %2437 = dma.vmem_to_hbm [thread:$0]  %s2433, 32, %s2435, [#allocation4]
    $region41: #{tpu_custom_call.1} parent=1 // pred_fallthru
      _
    // Predicated region
    $region42: #{tpu_custom_call.1} parent=1 // pred_check
      _
    $region43: #{tpu_custom_call.1} parent=1 // pred_check_branch
      %2439 = sbr.rel (0) target = $region45
    $region44: #{tpu_custom_call.1} parent=1 // pred_region
      %2441 = dma.done [#allocation4], 32
    $region45: #{tpu_custom_call.1} parent=1 // pred_fallthru
      _
    %2442 = vsyncpa [#allocation4], 1

</llo_original>
